<compile_context>
chip_gen: v7x
topology: tpu7x:2x2x1
jax: 0.10.0
libtpu: 0.0.40
codegen_flags: <defaults>
</compile_context>

<pallas_src>
import functools

import jax
import jax.numpy as jnp
from jax.experimental import pallas as pl
from jax.experimental.pallas import tpu as pltpu


def _conv_kernel(xcol_ref, w_ref, b_ref, y_ref, ysum_ref, ysq_ref):
    """One (batch, spatial-tile) step of the 3x3x3 conv as a matmul.

    xcol_ref: (1, K, TP)   K = 27 * Cin, TP = spatial tile (multiple of 128)
    w_ref:    (Cout, K)
    b_ref:    (Cout, 1)
    y_ref:    (1, Cout, TP)
    ysum_ref: (1, 1, Cout, 1)   per-tile channel sum   (for BN batch stats)
    ysq_ref:  (1, 1, Cout, 1)   per-tile channel sumsq (for BN batch stats)
    """
    y = jnp.dot(w_ref[...], xcol_ref[0],
                preferred_element_type=jnp.float32) + b_ref[...]
    y_ref[0] = y.astype(y_ref.dtype)
    # Per-channel partial sums for the BatchNorm batch statistics.
    ysum_ref[0, 0] = jnp.sum(y, axis=1, keepdims=True)
    ysq_ref[0, 0] = jnp.sum(y * y, axis=1, keepdims=True)


def _bn_act_kernel(y_ref, scale_ref, shift_ref, o_ref, *, act):
    """Folded BatchNorm (scale/shift) + activation on a lane-dense tile."""
    z = y_ref[0] * scale_ref[...] + shift_ref[...]
    if act == "relu":
        z = jnp.maximum(z, 0.0)
    elif act == "elu":
        z = jnp.where(z > 0, z, jnp.exp(z) - 1.0)
    else:
        raise NotImplementedError(act)
    o_ref[0] = z.astype(o_ref.dtype)


def lu_conv(x, weight, bias, gamma, beta, *, act="relu", eps=1e-5,
            p_block_max=2048):
    """LUConv forward: Conv3d(k=3, pad=1) -> BatchNorm3d(batch stats) -> act.

    x:      (N, Cin, D, H, W) float32
    weight: (Cout, Cin, 3, 3, 3)
    bias:   (Cout,)
    gamma, beta: (Cout,) BN affine parameters.
    """
    N, Cin, D, H, W = x.shape
    Cout = weight.shape[0]
    assert weight.shape == (Cout, Cin, 3, 3, 3)
    P = D * H * W
    assert P % 128 == 0, "flattened spatial size must be a multiple of 128"
    K = 27 * Cin

    # --- im2col: layout plumbing only (zero FLOPs); all MACs are in Pallas ---
    xp = jnp.pad(x, ((0, 0), (0, 0), (1, 1), (1, 1), (1, 1)))
    taps = [xp[:, :, kd:kd + D, kh:kh + H, kw:kw + W]
            for kd in range(3) for kh in range(3) for kw in range(3)]
    xcol = jnp.stack(taps, axis=1).reshape(N, K, P)            # (N, K, P)
    wflat = jnp.transpose(weight, (0, 2, 3, 4, 1)).reshape(Cout, K)
    b2 = bias.reshape(Cout, 1).astype(jnp.float32)

    # Pick the largest lane-dense spatial tile (multiple of 128) dividing P,
    # capped so double-buffered blocks stay small even on v7x's 64 MiB VMEM,
    # while still giving >=2 parallel grid steps per batch element (megacore).
    tp = P
    for cand in range(min(P, p_block_max), 127, -128):
        if P % cand == 0:
            tp = cand
            break
    n_p = P // tp
    grid = (N, n_p)
    cparams = pltpu.CompilerParams(
        dimension_semantics=("parallel", "parallel"),
        vmem_limit_bytes=32 * 1024 * 1024,
    )

    # ---------------- Kernel 1: conv (matmul) + BN partial sums -------------
    y, ysum, ysq = pl.pallas_call(
        _conv_kernel,
        out_shape=(
            jax.ShapeDtypeStruct((N, Cout, P), jnp.float32),
            jax.ShapeDtypeStruct((N, n_p, Cout, 1), jnp.float32),
            jax.ShapeDtypeStruct((N, n_p, Cout, 1), jnp.float32),
        ),
        grid_spec=pltpu.PrefetchScalarGridSpec(
            num_scalar_prefetch=0,
            grid=grid,
            in_specs=[
                pl.BlockSpec((1, K, tp), lambda n, p: (n, 0, p)),
                pl.BlockSpec((Cout, K), lambda n, p: (0, 0)),
                pl.BlockSpec((Cout, 1), lambda n, p: (0, 0)),
            ],
            out_specs=[
                pl.BlockSpec((1, Cout, tp), lambda n, p: (n, 0, p)),
                pl.BlockSpec((1, 1, Cout, 1), lambda n, p: (n, p, 0, 0)),
                pl.BlockSpec((1, 1, Cout, 1), lambda n, p: (n, p, 0, 0)),
            ],
        ),
        compiler_params=cparams,
    )(xcol, wflat, b2)

    # --- tiny scalar combine of the per-tile partials (done in XLA) ---------
    cnt = jnp.float32(N * P)
    s = jnp.sum(ysum[..., 0], axis=(0, 1))                     # (Cout,)
    ss = jnp.sum(ysq[..., 0], axis=(0, 1))                     # (Cout,)
    mean = s / cnt
    var = jnp.maximum(ss / cnt - mean * mean, 0.0)             # biased var
    inv = gamma * jax.lax.rsqrt(var + eps)
    scale = inv.reshape(Cout, 1).astype(jnp.float32)
    shift = (beta - mean * inv).reshape(Cout, 1).astype(jnp.float32)

    # ---------------- Kernel 2: folded BN + activation ----------------------
    out = pl.pallas_call(
        functools.partial(_bn_act_kernel, act=act),
        out_shape=jax.ShapeDtypeStruct((N, Cout, P), x.dtype),
        grid_spec=pltpu.PrefetchScalarGridSpec(
            num_scalar_prefetch=0,
            grid=grid,
            in_specs=[
                pl.BlockSpec((1, Cout, tp), lambda n, p: (n, 0, p)),
                pl.BlockSpec((Cout, 1), lambda n, p: (0, 0)),
                pl.BlockSpec((Cout, 1), lambda n, p: (0, 0)),
            ],
            out_specs=pl.BlockSpec((1, Cout, tp), lambda n, p: (n, 0, p)),
        ),
        compiler_params=cparams,
    )(y, scale, shift)

    return out.reshape(N, Cout, D, H, W)


def _reference(x, weight, bias, gamma, beta, eps=1e-5, act="relu"):
    """Pure-JAX reference of LUConv forward (training-mode BatchNorm)."""
    y = jax.lax.conv_general_dilated(
        x, weight, window_strides=(1, 1, 1), padding=((1, 1),) * 3,
        dimension_numbers=("NCDHW", "OIDHW", "NCDHW"))
    y = y + bias.reshape(1, -1, 1, 1, 1)
    mean = jnp.mean(y, axis=(0, 2, 3, 4), keepdims=True)
    var = jnp.var(y, axis=(0, 2, 3, 4), keepdims=True)
    z = (y - mean) * jax.lax.rsqrt(var + eps)
    z = z * gamma.reshape(1, -1, 1, 1, 1) + beta.reshape(1, -1, 1, 1, 1)
    if act == "relu":
        z = jnp.maximum(z, 0.0)
    elif act == "elu":
        z = jnp.where(z > 0, z, jnp.exp(z) - 1.0)
    return z


if __name__ == "__main__":
    key = jax.random.PRNGKey(0)
    kx, kw, kb, kg, kbt = jax.random.split(key, 5)
    N, Cin, Cout, D, H, W = 2, 4, 8, 16, 16, 16
    x = jax.random.normal(kx, (N, Cin, D, H, W), dtype=jnp.float32)
    weight = 0.1 * jax.random.normal(kw, (Cout, Cin, 3, 3, 3), dtype=jnp.float32)
    bias = 0.1 * jax.random.normal(kb, (Cout,), dtype=jnp.float32)
    gamma = 1.0 + 0.1 * jax.random.normal(kg, (Cout,), dtype=jnp.float32)
    beta = 0.1 * jax.random.normal(kbt, (Cout,), dtype=jnp.float32)

    out = lu_conv(x, weight, bias, gamma, beta, act="relu")
    out = jax.block_until_ready(out)

    ref = _reference(x, weight, bias, gamma, beta, act="relu")
    assert out.shape == ref.shape == (N, Cout, D, H, W)
    assert jnp.allclose(out, ref, atol=2e-3, rtol=2e-3), float(
        jnp.max(jnp.abs(out - ref)))
    print("KERNEL_OK")
</pallas_src>

<mosaic_0001>
module attributes {stable_mosaic.version = 11 : i64} {
  func.func @_conv_kernel(%arg0: i32, %arg1: i32, %arg2: memref<1x108x2048xf32, #tpu.memory_space<vmem>>, %arg3: memref<8x108xf32, #tpu.memory_space<vmem>>, %arg4: memref<8x1xf32, #tpu.memory_space<vmem>>, %arg5: memref<1x8x2048xf32, #tpu.memory_space<vmem>>, %arg6: memref<1x1x8x1xf32, #tpu.memory_space<vmem>>, %arg7: memref<1x1x8x1xf32, #tpu.memory_space<vmem>>) attributes {dimension_semantics = [#tpu.dimension_semantics<parallel>, #tpu.dimension_semantics<parallel>], iteration_bounds = array<i64: 2, 2>, scalar_prefetch = 0 : i64, scratch_operands = 0 : i64, tpu.core_type = #tpu.core_type<tc>, window_params = [{transform_indices = @transform_0, window_bounds = array<i64: 1, 108, 2048>}, {pipeline_mode = #tpu.pipeline_mode<synchronous>, transform_indices = @transform_1, window_bounds = array<i64: 8, 108>}, {pipeline_mode = #tpu.pipeline_mode<synchronous>, transform_indices = @transform_2, window_bounds = array<i64: 8, 1>}, {transform_indices = @transform_3, window_bounds = array<i64: 1, 8, 2048>}, {transform_indices = @transform_4, window_bounds = array<i64: 1, 1, 8, 1>}, {transform_indices = @transform_5, window_bounds = array<i64: 1, 1, 8, 1>}]} {
    %c0 = arith.constant 0 : index
    %c0_0 = arith.constant 0 : index
    %0 = vector.load %arg3[%c0, %c0_0] : memref<8x108xf32, #tpu.memory_space<vmem>>, vector<8x108xf32>
    %c0_1 = arith.constant 0 : index
    %c0_2 = arith.constant 0 : index
    %c0_3 = arith.constant 0 : index
    %1 = vector.load %arg2[%c0_1, %c0_2, %c0_3] : memref<1x108x2048xf32, #tpu.memory_space<vmem>>, vector<1x108x2048xf32>
    %2 = vector.shape_cast %1 : vector<1x108x2048xf32> to vector<108x2048xf32>
    %cst = arith.constant dense<0.000000e+00> : vector<8x2048xf32>
    %3 = tpu.matmul %0, %2, %cst {dimension_numbers = #tpu.dot_dimension_numbers<[1], [0], [0], [1], [0, 0, 1, 1], [], []>} : vector<8x108xf32>, vector<108x2048xf32>, vector<8x2048xf32> -> vector<8x2048xf32>
    %c0_4 = arith.constant 0 : index
    %c0_5 = arith.constant 0 : index
    %4 = vector.load %arg4[%c0_4, %c0_5] : memref<8x1xf32, #tpu.memory_space<vmem>>, vector<8x1xf32>
    %5 = vector.broadcast %4 : vector<8x1xf32> to vector<8x2048xf32>
    %6 = arith.addf %3, %5 : vector<8x2048xf32>
    %c0_6 = arith.constant 0 : index
    %c0_7 = arith.constant 0 : index
    %c0_8 = arith.constant 0 : index
    %7 = vector.load %arg5[%c0_6, %c0_7, %c0_8] : memref<1x8x2048xf32, #tpu.memory_space<vmem>>, vector<1x8x2048xf32>
    %8 = vector.shape_cast %7 : vector<1x8x2048xf32> to vector<8x2048xf32>
    %9 = vector.shape_cast %6 : vector<8x2048xf32> to vector<1x8x2048xf32>
    tpu.vector_store %arg5[%c0_6, %c0_7, %c0_8], %9 {strides = array<i32>} : memref<1x8x2048xf32, #tpu.memory_space<vmem>>, vector<1x8x2048xf32>,
    %cst_9 = arith.constant dense<0.000000e+00> : vector<8xf32>
    %10 = vector.multi_reduction <add>, %6, %cst_9 [1] : vector<8x2048xf32> to vector<8xf32>
    %11 = vector.shape_cast %10 : vector<8xf32> to vector<8x1xf32>
    %c0_10 = arith.constant 0 : index
    %c0_11 = arith.constant 0 : index
    %c0_12 = arith.constant 0 : index
    %c0_13 = arith.constant 0 : index
    %12 = vector.load %arg6[%c0_10, %c0_11, %c0_12, %c0_13] : memref<1x1x8x1xf32, #tpu.memory_space<vmem>>, vector<1x1x8x1xf32>
    %13 = vector.shape_cast %12 : vector<1x1x8x1xf32> to vector<8x1xf32>
    %14 = vector.shape_cast %11 : vector<8x1xf32> to vector<1x1x8x1xf32>
    tpu.vector_store %arg6[%c0_10, %c0_11, %c0_12, %c0_13], %14 {strides = array<i32>} : memref<1x1x8x1xf32, #tpu.memory_space<vmem>>, vector<1x1x8x1xf32>,
    %15 = arith.mulf %6, %6 : vector<8x2048xf32>
    %cst_14 = arith.constant dense<0.000000e+00> : vector<8xf32>
    %16 = vector.multi_reduction <add>, %15, %cst_14 [1] : vector<8x2048xf32> to vector<8xf32>
    %17 = vector.shape_cast %16 : vector<8xf32> to vector<8x1xf32>
    %c0_15 = arith.constant 0 : index
    %c0_16 = arith.constant 0 : index
    %c0_17 = arith.constant 0 : index
    %c0_18 = arith.constant 0 : index
    %18 = vector.load %arg7[%c0_15, %c0_16, %c0_17, %c0_18] : memref<1x1x8x1xf32, #tpu.memory_space<vmem>>, vector<1x1x8x1xf32>
    %19 = vector.shape_cast %18 : vector<1x1x8x1xf32> to vector<8x1xf32>
    %20 = vector.shape_cast %17 : vector<8x1xf32> to vector<1x1x8x1xf32>
    tpu.vector_store %arg7[%c0_15, %c0_16, %c0_17, %c0_18], %20 {strides = array<i32>} : memref<1x1x8x1xf32, #tpu.memory_space<vmem>>, vector<1x1x8x1xf32>,
    return
  }
  func.func @transform_0(%arg0: i32, %arg1: i32) -> (i32, i32, i32) {
    %c0_i32 = arith.constant 0 : i32
    %c0_i32_0 = arith.constant 0 : i32
    return %arg0, %c0_i32, %arg1 : i32, i32, i32
  }
  func.func @transform_1(%arg0: i32, %arg1: i32) -> (i32, i32) {
    %c0_i32 = arith.constant 0 : i32
    %c0_i32_0 = arith.constant 0 : i32
    %c0_i32_1 = arith.constant 0 : i32
    return %c0_i32, %c0_i32_0 : i32, i32
  }
  func.func @transform_2(%arg0: i32, %arg1: i32) -> (i32, i32) {
    %c0_i32 = arith.constant 0 : i32
    %c0_i32_0 = arith.constant 0 : i32
    %c0_i32_1 = arith.constant 0 : i32
    return %c0_i32, %c0_i32_0 : i32, i32
  }
  func.func @transform_3(%arg0: i32, %arg1: i32) -> (i32, i32, i32) {
    %c0_i32 = arith.constant 0 : i32
    %c0_i32_0 = arith.constant 0 : i32
    return %arg0, %c0_i32, %arg1 : i32, i32, i32
  }
  func.func @transform_4(%arg0: i32, %arg1: i32) -> (i32, i32, i32, i32) {
    %c0_i32 = arith.constant 0 : i32
    %c0_i32_0 = arith.constant 0 : i32
    %c0_i32_1 = arith.constant 0 : i32
    return %arg0, %arg1, %c0_i32, %c0_i32_0 : i32, i32, i32, i32
  }
  func.func @transform_5(%arg0: i32, %arg1: i32) -> (i32, i32, i32, i32) {
    %c0_i32 = arith.constant 0 : i32
    %c0_i32_0 = arith.constant 0 : i32
    %c0_i32_1 = arith.constant 0 : i32
    return %arg0, %arg1, %c0_i32, %c0_i32_0 : i32, i32, i32, i32
  }
}

</mosaic_0001>

<llo_original>
// kernel: tpu_custom_call.1
$region0: #{tpu_custom_call.1}
  #allocation0 [shape = 'u32[]', space=smem, size = 0x4, offset = 0x4, fixed_abs, tag = 'smem constant byte address 0x4 - core index']
  #allocation1 [shape = 'u32[144,128]{1,0:T(1,128)}', space=vmem, size = 0x12000, scoped, tag = 'internal scratch']
  %s0 = inlined_call_operand.vmem [shape: f32[2,108,4096], index: 0, kind: input, shape index: {}]
  %s1 = inlined_call_operand.vmem [shape: f32[8,108], index: 1, kind: input, shape index: {}]
  %s2 = inlined_call_operand.vmem [shape: f32[8,1], index: 2, kind: input, shape index: {}]
  %s3 = inlined_call_operand.hbm [shape: f32[2,8,4096], index: 3, kind: output, shape index: {0}]
  %s4 = inlined_call_operand.vmem [shape: f32[2,2,8,1], index: 4, kind: output, shape index: {1}]
  %s5 = inlined_call_operand.vmem [shape: f32[2,2,8,1], index: 5, kind: output, shape index: {2}]
  %6 = xla_tuple %s3, %s4, %s5
  %s7 = sld [smem:[#allocation0]]
  $region84: #{tpu_custom_call.1} parent=0
    _
  %s9 = ssub.s32 1, %s7
  %s10 = scalar_select 0, %s9, %s7
  $region1: #{tpu_custom_call.1} parent=0
    #allocation2 [shape = 'u8[1835008]{0}', space=vmem, size = 0x1c0000, scoped, tag = 'input window, operand 0']
    #allocation3 [shape = 'u8[131072]{0}', space=vmem, size = 0x20000, scoped, tag = 'output window, operand 0']
    #allocation4 [shape = 's32[2]{0}', space=sflag, size = 0x8, scoped, tag = 'scoped memory for tpu_custom_call.1']
    %11 = vsyncpa [#allocation4], 0
    %s12 = scalar_lea.sflag [#allocation4], 1
    %13 = vsyncpa %s12, 0
    loop: start=0, step=1, limit=6
    $region2: #{tpu_custom_call.1} parent=1 // loop_pre_header
      _
    $region3: #{tpu_custom_call.1} parent=1 // loop_header
      %s15 = sphi 0, %s19
      %p16 = scmp.ge.s32.totalorder %s15, 6
      %s22 = sphi 0, %s34
      %s23 = sphi 0, %s30
      %s24 = sphi 0, %s22
      %s25 = sphi 0, %s23
      %s26 = sphi 0, %s24
      %s27 = sphi 0, %s25
      %s39 = sphi 0, %s41
      %s42 = sphi 0, %s39
      %s43 = sphi 0, %s42
      %s59 = sphi 0, %s43
      %s63 = sphi 0, %s63
      %s65 = sphi 0, %s63
      %s66 = sphi 0, %s65
      %s80 = sphi 0, %s66
      %s84 = sphi 0, %s84
      %s86 = sphi 0, %s84
      %s87 = sphi 0, %s86
      %s101 = sphi 0, %s87
      %s109 = sphi 0, %s111
      %s112 = sphi 0, %s109
      %s113 = sphi 0, %s112
      %s129 = sphi 0, %s113
      %s137 = sphi 0, %s139
      %s140 = sphi 0, %s137
      %s141 = sphi 0, %s140
      %s157 = sphi 0, %s141
      %s165 = sphi 0, %s167
      %s168 = sphi 0, %s165
      %s169 = sphi 0, %s168
      %s185 = sphi 0, %s169
    $region4: #{tpu_custom_call.1} parent=1 // loop_header_branch
      %18 = sbr.rel (%p16) target = $region8
    $region5: #{tpu_custom_call.1} parent=1 // loop_body
      %s20 = ssub.s32 %s15, 1
      %s21 = ssub.s32 %s15, 2
      %s28 = sadd.s32 1, %s23
      %p29 = scmp.ge.s32.totalorder %s28, 2
      %s30 = scalar_select %p29, 0, %s28
      %s31 = sadd.s32 1, %s22
      %s32 = scalar_select %p29, %s31, %s22
      %p33 = scmp.ge.s32.totalorder %s32, 2
      %s34 = scalar_select %p33, 0, %s32
      %s35 = ssub.s32 %s22, %s34
      %s36 = ssub.s32 %s23, %s30
      %s37 = sor.u32 %s35, %s36
      %p38 = scmp.eq.s32.totalorder %s37, 0
      %s40 = sadd.s32 %s39, 1
      %s41 = scalar_select %p38, %s39, %s40
      %p44 = pneg %p38
      %p45 = scmp.eq.s32.totalorder %s15, 3
      %p46 = por %p44, %p45
      %p47 = scmp.ne.s32.totalorder %s39, %s42
      %p48 = scmp.eq.s32.totalorder %s15, 0
      %p49 = por %p47, %p48
      %p50 = scmp.ne.s32.totalorder %s39, %s42
      %p51 = scmp.eq.s32.totalorder %s20, 3
      %p52 = por %p50, %p51
      %p53 = scmp.ne.s32.totalorder %s42, %s43
      %p54 = scmp.eq.s32.totalorder %s20, 0
      %p55 = por %p53, %p54
      %p56 = scmp.ne.s32.totalorder %s42, %s43
      %p57 = scmp.eq.s32.totalorder %s21, 3
      %p58 = por %p56, %p57
      %p60 = scmp.ne.s32.totalorder %s43, %s59
      %p61 = scmp.eq.s32.totalorder %s21, 0
      %p62 = por %p60, %p61
      %s64 = sadd.s32 %s63, 1
      %p67 = scmp.eq.s32.totalorder %s15, 3
      %p68 = scmp.ne.s32.totalorder %s63, %s65
      %p69 = scmp.eq.s32.totalorder %s15, 0
      %p70 = por %p68, %p69
      %p71 = scmp.ne.s32.totalorder %s63, %s65
      %p72 = scmp.eq.s32.totalorder %s20, 3
      %p73 = por %p71, %p72
      %p74 = scmp.ne.s32.totalorder %s65, %s66
      %p75 = scmp.eq.s32.totalorder %s20, 0
      %p76 = por %p74, %p75
      %p77 = scmp.ne.s32.totalorder %s65, %s66
      %p78 = scmp.eq.s32.totalorder %s21, 3
      %p79 = por %p77, %p78
      %p81 = scmp.ne.s32.totalorder %s66, %s80
      %p82 = scmp.eq.s32.totalorder %s21, 0
      %p83 = por %p81, %p82
      %s85 = sadd.s32 %s84, 1
      %p88 = scmp.eq.s32.totalorder %s15, 3
      %p89 = scmp.ne.s32.totalorder %s84, %s86
      %p90 = scmp.eq.s32.totalorder %s15, 0
      %p91 = por %p89, %p90
      %p92 = scmp.ne.s32.totalorder %s84, %s86
      %p93 = scmp.eq.s32.totalorder %s20, 3
      %p94 = por %p92, %p93
      %p95 = scmp.ne.s32.totalorder %s86, %s87
      %p96 = scmp.eq.s32.totalorder %s20, 0
      %p97 = por %p95, %p96
      %p98 = scmp.ne.s32.totalorder %s86, %s87
      %p99 = scmp.eq.s32.totalorder %s21, 3
      %p100 = por %p98, %p99
      %p102 = scmp.ne.s32.totalorder %s87, %s101
      %p103 = scmp.eq.s32.totalorder %s21, 0
      %p104 = por %p102, %p103
      %s105 = ssub.s32 %s22, %s34
      %s106 = ssub.s32 %s23, %s30
      %s107 = sor.u32 %s105, %s106
      %p108 = scmp.eq.s32.totalorder %s107, 0
      %s110 = sadd.s32 %s109, 1
      %s111 = scalar_select %p108, %s109, %s110
      %p114 = pneg %p108
      %p115 = scmp.eq.s32.totalorder %s15, 3
      %p116 = por %p114, %p115
      %p117 = scmp.ne.s32.totalorder %s109, %s112
      %p118 = scmp.eq.s32.totalorder %s15, 0
      %p119 = por %p117, %p118
      %p120 = scmp.ne.s32.totalorder %s109, %s112
      %p121 = scmp.eq.s32.totalorder %s20, 3
      %p122 = por %p120, %p121
      %p123 = scmp.ne.s32.totalorder %s112, %s113
      %p124 = scmp.eq.s32.totalorder %s20, 0
      %p125 = por %p123, %p124
      %p126 = scmp.ne.s32.totalorder %s112, %s113
      %p127 = scmp.eq.s32.totalorder %s21, 3
      %p128 = por %p126, %p127
      %p130 = scmp.ne.s32.totalorder %s113, %s129
      %p131 = scmp.eq.s32.totalorder %s21, 0
      %p132 = por %p130, %p131
      %s133 = ssub.s32 %s22, %s34
      %s134 = ssub.s32 %s23, %s30
      %s135 = sor.u32 %s133, %s134
      %p136 = scmp.eq.s32.totalorder %s135, 0
      %s138 = sadd.s32 %s137, 1
      %s139 = scalar_select %p136, %s137, %s138
      %p142 = pneg %p136
      %p143 = scmp.eq.s32.totalorder %s15, 3
      %p144 = por %p142, %p143
      %p145 = scmp.ne.s32.totalorder %s137, %s140
      %p146 = scmp.eq.s32.totalorder %s15, 0
      %p147 = por %p145, %p146
      %p148 = scmp.ne.s32.totalorder %s137, %s140
      %p149 = scmp.eq.s32.totalorder %s20, 3
      %p150 = por %p148, %p149
      %p151 = scmp.ne.s32.totalorder %s140, %s141
      %p152 = scmp.eq.s32.totalorder %s20, 0
      %p153 = por %p151, %p152
      %p154 = scmp.ne.s32.totalorder %s140, %s141
      %p155 = scmp.eq.s32.totalorder %s21, 3
      %p156 = por %p154, %p155
      %p158 = scmp.ne.s32.totalorder %s141, %s157
      %p159 = scmp.eq.s32.totalorder %s21, 0
      %p160 = por %p158, %p159
      %s161 = ssub.s32 %s22, %s34
      %s162 = ssub.s32 %s23, %s30
      %s163 = sor.u32 %s161, %s162
      %p164 = scmp.eq.s32.totalorder %s163, 0
      %s166 = sadd.s32 %s165, 1
      %s167 = scalar_select %p164, %s165, %s166
      %p170 = pneg %p164
      %p171 = scmp.eq.s32.totalorder %s15, 3
      %p172 = por %p170, %p171
      %p173 = scmp.ne.s32.totalorder %s165, %s168
      %p174 = scmp.eq.s32.totalorder %s15, 0
      %p175 = por %p173, %p174
      %p176 = scmp.ne.s32.totalorder %s165, %s168
      %p177 = scmp.eq.s32.totalorder %s20, 3
      %p178 = por %p176, %p177
      %p179 = scmp.ne.s32.totalorder %s168, %s169
      %p180 = scmp.eq.s32.totalorder %s20, 0
      %p181 = por %p179, %p180
      %p182 = scmp.ne.s32.totalorder %s168, %s169
      %p183 = scmp.eq.s32.totalorder %s21, 3
      %p184 = por %p182, %p183
      %p186 = scmp.ne.s32.totalorder %s169, %s185
      %p187 = scmp.eq.s32.totalorder %s21, 0
      %p188 = por %p186, %p187
      %p189 = scmp.le.s32.totalorder 1, %s15
      %p190 = scmp.lt.s32.totalorder %s15, 5
      %p191 = pnand %p189, %p190
      %p192 = pneg %p191
      // Predicated region
      $region9: #{tpu_custom_call.1} parent=5 // pred_check
        _
      $region10: #{tpu_custom_call.1} parent=5 // pred_check_branch
        %194 = sbr.rel (%p191) target = $region12
      $region11: #{tpu_custom_call.1} parent=5 // pred_region
        %s195 = ssub.s32 %s15, 1
        // Predicated region
        $region13: #{tpu_custom_call.1} parent=11 // pred_check
          %p196 = pneg %p76
        $region14: #{tpu_custom_call.1} parent=11 // pred_check_branch
          %198 = sbr.rel (%p196) target = $region16
        $region15: #{tpu_custom_call.1} parent=11 // pred_region
          _
        $region16: #{tpu_custom_call.1} parent=11 // pred_fallthru
          _
        // Predicated region
        $region17: #{tpu_custom_call.1} parent=11 // pred_check
          %p199 = pneg %p97
        $region18: #{tpu_custom_call.1} parent=11 // pred_check_branch
          %201 = sbr.rel (%p199) target = $region20
        $region19: #{tpu_custom_call.1} parent=11 // pred_region
          _
        $region20: #{tpu_custom_call.1} parent=11 // pred_fallthru
          _
      $region12: #{tpu_custom_call.1} parent=5 // pred_fallthru
        _
      %p202 = scmp.lt.s32.totalorder %s15, 4
      // Predicated region
      $region21: #{tpu_custom_call.1} parent=5 // pred_check
        %p203 = pneg %p202
      $region22: #{tpu_custom_call.1} parent=5 // pred_check_branch
        %205 = sbr.rel (%p203) target = $region24
      $region23: #{tpu_custom_call.1} parent=5 // pred_region
        // Predicated region
        $region25: #{tpu_custom_call.1} parent=23 // pred_check
          %p206 = pneg %p49
        $region26: #{tpu_custom_call.1} parent=23 // pred_check_branch
          %208 = sbr.rel (%p206) target = $region28
        $region27: #{tpu_custom_call.1} parent=23 // pred_region
          %s209 = sand.u32 %s39, 1
          %s210 = sand.u32 %s39, 1
          %s211 = smul.addr %s210, 1792
          %s212 = scalar_lea.vmem [#allocation2], %s211
          %s213 = smul.u32 16, %s23
          %s214 = smul.addr %s22, 448
          %s215 = sadd.s32 %s213, %s214
          %s216 = smul.addr %s215, 8
          %s217 = scalar_lea.vmem %s0, %s216
          // Predicated region
          $region29: #{tpu_custom_call.1} parent=27 // pred_check
            _
          $region30: #{tpu_custom_call.1} parent=27 // pred_check_branch
            %219 = sbr.rel (0) target = $region32
          $region31: #{tpu_custom_call.1} parent=27 // pred_region
            // Predicated region
            $region33: #{tpu_custom_call.1} parent=31 // pred_check
              _
            $region34: #{tpu_custom_call.1} parent=31 // pred_check_branch
              %221 = sbr.rel (0) target = $region36
            $region35: #{tpu_custom_call.1} parent=31 // pred_region
              loop: start=0, step=1, limit=1
              $region37: #{tpu_custom_call.1} parent=35 // loop_pre_header
                _
              $region38: #{tpu_custom_call.1} parent=35 // loop_header
                %s223 = sphi 0, %s227
                %p224 = scmp.ge.s32.totalorder %s223, 1
                %s228 = sphi %s217, %s217
                %s229 = sphi %s212, %s212
              $region39: #{tpu_custom_call.1} parent=35 // loop_header_branch
                %226 = sbr.rel (%p224) target = $region43
              $region40: #{tpu_custom_call.1} parent=35 // loop_body
                %v230 = vld [vmem:[%s228] sm:$0xff]
                %231 = vst [vmem:[%s229] sm:$0xff] %v230
                %v232 = vld [vmem:[%s228 + $0x8] sm:$0xff]
                %233 = vst [vmem:[%s229 + $0x8] sm:$0xff] %v232
                %v234 = vld [vmem:[%s228 + $0x10] sm:$0xff]
                %235 = vst [vmem:[%s229 + $0x10] sm:$0xff] %v234
                %v236 = vld [vmem:[%s228 + $0x18] sm:$0xff]
                %237 = vst [vmem:[%s229 + $0x18] sm:$0xff] %v236
                %v238 = vld [vmem:[%s228 + $0x20] sm:$0xff]
                %239 = vst [vmem:[%s229 + $0x20] sm:$0xff] %v238
                %v240 = vld [vmem:[%s228 + $0x28] sm:$0xff]
                %241 = vst [vmem:[%s229 + $0x28] sm:$0xff] %v240
                %v242 = vld [vmem:[%s228 + $0x30] sm:$0xff]
                %243 = vst [vmem:[%s229 + $0x30] sm:$0xff] %v242
                %v244 = vld [vmem:[%s228 + $0x38] sm:$0xff]
                %245 = vst [vmem:[%s229 + $0x38] sm:$0xff] %v244
                %v246 = vld [vmem:[%s228 + $0x40] sm:$0xff]
                %247 = vst [vmem:[%s229 + $0x40] sm:$0xff] %v246
                %v248 = vld [vmem:[%s228 + $0x48] sm:$0xff]
                %249 = vst [vmem:[%s229 + $0x48] sm:$0xff] %v248
                %v250 = vld [vmem:[%s228 + $0x50] sm:$0xff]
                %251 = vst [vmem:[%s229 + $0x50] sm:$0xff] %v250
                %v252 = vld [vmem:[%s228 + $0x58] sm:$0xff]
                %253 = vst [vmem:[%s229 + $0x58] sm:$0xff] %v252
                %v254 = vld [vmem:[%s228 + $0x60] sm:$0xff]
                %255 = vst [vmem:[%s229 + $0x60] sm:$0xff] %v254
                %v256 = vld [vmem:[%s228 + $0x68] sm:$0xff]
                %257 = vst [vmem:[%s229 + $0x68] sm:$0xff] %v256
                %v258 = vld [vmem:[%s228 + $0x70] sm:$0xff]
                %259 = vst [vmem:[%s229 + $0x70] sm:$0xff] %v258
                %v260 = vld [vmem:[%s228 + $0x78] sm:$0xff]
                %261 = vst [vmem:[%s229 + $0x78] sm:$0xff] %v260
                %v262 = vld [vmem:[%s228 + $0x100] sm:$0xff]
                %263 = vst [vmem:[%s229 + $0x80] sm:$0xff] %v262
                %v264 = vld [vmem:[%s228 + $0x108] sm:$0xff]
                %265 = vst [vmem:[%s229 + $0x88] sm:$0xff] %v264
                %v266 = vld [vmem:[%s228 + $0x110] sm:$0xff]
                %267 = vst [vmem:[%s229 + $0x90] sm:$0xff] %v266
                %v268 = vld [vmem:[%s228 + $0x118] sm:$0xff]
                %269 = vst [vmem:[%s229 + $0x98] sm:$0xff] %v268
                %v270 = vld [vmem:[%s228 + $0x120] sm:$0xff]
                %271 = vst [vmem:[%s229 + $0xa0] sm:$0xff] %v270
                %v272 = vld [vmem:[%s228 + $0x128] sm:$0xff]
                %273 = vst [vmem:[%s229 + $0xa8] sm:$0xff] %v272
                %v274 = vld [vmem:[%s228 + $0x130] sm:$0xff]
                %275 = vst [vmem:[%s229 + $0xb0] sm:$0xff] %v274
                %v276 = vld [vmem:[%s228 + $0x138] sm:$0xff]
                %277 = vst [vmem:[%s229 + $0xb8] sm:$0xff] %v276
                %v278 = vld [vmem:[%s228 + $0x140] sm:$0xff]
                %279 = vst [vmem:[%s229 + $0xc0] sm:$0xff] %v278
                %v280 = vld [vmem:[%s228 + $0x148] sm:$0xff]
                %281 = vst [vmem:[%s229 + $0xc8] sm:$0xff] %v280
                %v282 = vld [vmem:[%s228 + $0x150] sm:$0xff]
                %283 = vst [vmem:[%s229 + $0xd0] sm:$0xff] %v282
                %v284 = vld [vmem:[%s228 + $0x158] sm:$0xff]
                %285 = vst [vmem:[%s229 + $0xd8] sm:$0xff] %v284
                %v286 = vld [vmem:[%s228 + $0x160] sm:$0xff]
                %287 = vst [vmem:[%s229 + $0xe0] sm:$0xff] %v286
                %v288 = vld [vmem:[%s228 + $0x168] sm:$0xff]
                %289 = vst [vmem:[%s229 + $0xe8] sm:$0xff] %v288
                %v290 = vld [vmem:[%s228 + $0x170] sm:$0xff]
                %291 = vst [vmem:[%s229 + $0xf0] sm:$0xff] %v290
                %v292 = vld [vmem:[%s228 + $0x178] sm:$0xff]
                %293 = vst [vmem:[%s229 + $0xf8] sm:$0xff] %v292
                %v294 = vld [vmem:[%s228 + $0x200] sm:$0xff]
                %295 = vst [vmem:[%s229 + $0x100] sm:$0xff] %v294
                %v296 = vld [vmem:[%s228 + $0x208] sm:$0xff]
                %297 = vst [vmem:[%s229 + $0x108] sm:$0xff] %v296
                %v298 = vld [vmem:[%s228 + $0x210] sm:$0xff]
                %299 = vst [vmem:[%s229 + $0x110] sm:$0xff] %v298
                %v300 = vld [vmem:[%s228 + $0x218] sm:$0xff]
                %301 = vst [vmem:[%s229 + $0x118] sm:$0xff] %v300
                %v302 = vld [vmem:[%s228 + $0x220] sm:$0xff]
                %303 = vst [vmem:[%s229 + $0x120] sm:$0xff] %v302
                %v304 = vld [vmem:[%s228 + $0x228] sm:$0xff]
                %305 = vst [vmem:[%s229 + $0x128] sm:$0xff] %v304
                %v306 = vld [vmem:[%s228 + $0x230] sm:$0xff]
                %307 = vst [vmem:[%s229 + $0x130] sm:$0xff] %v306
                %v308 = vld [vmem:[%s228 + $0x238] sm:$0xff]
                %309 = vst [vmem:[%s229 + $0x138] sm:$0xff] %v308
                %v310 = vld [vmem:[%s228 + $0x240] sm:$0xff]
                %311 = vst [vmem:[%s229 + $0x140] sm:$0xff] %v310
                %v312 = vld [vmem:[%s228 + $0x248] sm:$0xff]
                %313 = vst [vmem:[%s229 + $0x148] sm:$0xff] %v312
                %v314 = vld [vmem:[%s228 + $0x250] sm:$0xff]
                %315 = vst [vmem:[%s229 + $0x150] sm:$0xff] %v314
                %v316 = vld [vmem:[%s228 + $0x258] sm:$0xff]
                %317 = vst [vmem:[%s229 + $0x158] sm:$0xff] %v316
                %v318 = vld [vmem:[%s228 + $0x260] sm:$0xff]
                %319 = vst [vmem:[%s229 + $0x160] sm:$0xff] %v318
                %v320 = vld [vmem:[%s228 + $0x268] sm:$0xff]
                %321 = vst [vmem:[%s229 + $0x168] sm:$0xff] %v320
                %v322 = vld [vmem:[%s228 + $0x270] sm:$0xff]
                %323 = vst [vmem:[%s229 + $0x170] sm:$0xff] %v322
                %v324 = vld [vmem:[%s228 + $0x278] sm:$0xff]
                %325 = vst [vmem:[%s229 + $0x178] sm:$0xff] %v324
                %v326 = vld [vmem:[%s228 + $0x300] sm:$0xff]
                %327 = vst [vmem:[%s229 + $0x180] sm:$0xff] %v326
                %v328 = vld [vmem:[%s228 + $0x308] sm:$0xff]
                %329 = vst [vmem:[%s229 + $0x188] sm:$0xff] %v328
                %v330 = vld [vmem:[%s228 + $0x310] sm:$0xff]
                %331 = vst [vmem:[%s229 + $0x190] sm:$0xff] %v330
                %v332 = vld [vmem:[%s228 + $0x318] sm:$0xff]
                %333 = vst [vmem:[%s229 + $0x198] sm:$0xff] %v332
                %v334 = vld [vmem:[%s228 + $0x320] sm:$0xff]
                %335 = vst [vmem:[%s229 + $0x1a0] sm:$0xff] %v334
                %v336 = vld [vmem:[%s228 + $0x328] sm:$0xff]
                %337 = vst [vmem:[%s229 + $0x1a8] sm:$0xff] %v336
                %v338 = vld [vmem:[%s228 + $0x330] sm:$0xff]
                %339 = vst [vmem:[%s229 + $0x1b0] sm:$0xff] %v338
                %v340 = vld [vmem:[%s228 + $0x338] sm:$0xff]
                %341 = vst [vmem:[%s229 + $0x1b8] sm:$0xff] %v340
                %v342 = vld [vmem:[%s228 + $0x340] sm:$0xff]
                %343 = vst [vmem:[%s229 + $0x1c0] sm:$0xff] %v342
                %v344 = vld [vmem:[%s228 + $0x348] sm:$0xff]
                %345 = vst [vmem:[%s229 + $0x1c8] sm:$0xff] %v344
                %v346 = vld [vmem:[%s228 + $0x350] sm:$0xff]
                %347 = vst [vmem:[%s229 + $0x1d0] sm:$0xff] %v346
                %v348 = vld [vmem:[%s228 + $0x358] sm:$0xff]
                %349 = vst [vmem:[%s229 + $0x1d8] sm:$0xff] %v348
                %v350 = vld [vmem:[%s228 + $0x360] sm:$0xff]
                %351 = vst [vmem:[%s229 + $0x1e0] sm:$0xff] %v350
                %v352 = vld [vmem:[%s228 + $0x368] sm:$0xff]
                %353 = vst [vmem:[%s229 + $0x1e8] sm:$0xff] %v352
                %v354 = vld [vmem:[%s228 + $0x370] sm:$0xff]
                %355 = vst [vmem:[%s229 + $0x1f0] sm:$0xff] %v354
                %v356 = vld [vmem:[%s228 + $0x378] sm:$0xff]
                %357 = vst [vmem:[%s229 + $0x1f8] sm:$0xff] %v356
                %v358 = vld [vmem:[%s228 + $0x400] sm:$0xff]
                %359 = vst [vmem:[%s229 + $0x200] sm:$0xff] %v358
                %v360 = vld [vmem:[%s228 + $0x408] sm:$0xff]
                %361 = vst [vmem:[%s229 + $0x208] sm:$0xff] %v360
                %v362 = vld [vmem:[%s228 + $0x410] sm:$0xff]
                %363 = vst [vmem:[%s229 + $0x210] sm:$0xff] %v362
                %v364 = vld [vmem:[%s228 + $0x418] sm:$0xff]
                %365 = vst [vmem:[%s229 + $0x218] sm:$0xff] %v364
                %v366 = vld [vmem:[%s228 + $0x420] sm:$0xff]
                %367 = vst [vmem:[%s229 + $0x220] sm:$0xff] %v366
                %v368 = vld [vmem:[%s228 + $0x428] sm:$0xff]
                %369 = vst [vmem:[%s229 + $0x228] sm:$0xff] %v368
                %v370 = vld [vmem:[%s228 + $0x430] sm:$0xff]
                %371 = vst [vmem:[%s229 + $0x230] sm:$0xff] %v370
                %v372 = vld [vmem:[%s228 + $0x438] sm:$0xff]
                %373 = vst [vmem:[%s229 + $0x238] sm:$0xff] %v372
                %v374 = vld [vmem:[%s228 + $0x440] sm:$0xff]
                %375 = vst [vmem:[%s229 + $0x240] sm:$0xff] %v374
                %v376 = vld [vmem:[%s228 + $0x448] sm:$0xff]
                %377 = vst [vmem:[%s229 + $0x248] sm:$0xff] %v376
                %v378 = vld [vmem:[%s228 + $0x450] sm:$0xff]
                %379 = vst [vmem:[%s229 + $0x250] sm:$0xff] %v378
                %v380 = vld [vmem:[%s228 + $0x458] sm:$0xff]
                %381 = vst [vmem:[%s229 + $0x258] sm:$0xff] %v380
                %v382 = vld [vmem:[%s228 + $0x460] sm:$0xff]
                %383 = vst [vmem:[%s229 + $0x260] sm:$0xff] %v382
                %v384 = vld [vmem:[%s228 + $0x468] sm:$0xff]
                %385 = vst [vmem:[%s229 + $0x268] sm:$0xff] %v384
                %v386 = vld [vmem:[%s228 + $0x470] sm:$0xff]
                %387 = vst [vmem:[%s229 + $0x270] sm:$0xff] %v386
                %v388 = vld [vmem:[%s228 + $0x478] sm:$0xff]
                %389 = vst [vmem:[%s229 + $0x278] sm:$0xff] %v388
                %v390 = vld [vmem:[%s228 + $0x500] sm:$0xff]
                %391 = vst [vmem:[%s229 + $0x280] sm:$0xff] %v390
                %v392 = vld [vmem:[%s228 + $0x508] sm:$0xff]
                %393 = vst [vmem:[%s229 + $0x288] sm:$0xff] %v392
                %v394 = vld [vmem:[%s228 + $0x510] sm:$0xff]
                %395 = vst [vmem:[%s229 + $0x290] sm:$0xff] %v394
                %v396 = vld [vmem:[%s228 + $0x518] sm:$0xff]
                %397 = vst [vmem:[%s229 + $0x298] sm:$0xff] %v396
                %v398 = vld [vmem:[%s228 + $0x520] sm:$0xff]
                %399 = vst [vmem:[%s229 + $0x2a0] sm:$0xff] %v398
                %v400 = vld [vmem:[%s228 + $0x528] sm:$0xff]
                %401 = vst [vmem:[%s229 + $0x2a8] sm:$0xff] %v400
                %v402 = vld [vmem:[%s228 + $0x530] sm:$0xff]
                %403 = vst [vmem:[%s229 + $0x2b0] sm:$0xff] %v402
                %v404 = vld [vmem:[%s228 + $0x538] sm:$0xff]
                %405 = vst [vmem:[%s229 + $0x2b8] sm:$0xff] %v404
                %v406 = vld [vmem:[%s228 + $0x540] sm:$0xff]
                %407 = vst [vmem:[%s229 + $0x2c0] sm:$0xff] %v406
                %v408 = vld [vmem:[%s228 + $0x548] sm:$0xff]
                %409 = vst [vmem:[%s229 + $0x2c8] sm:$0xff] %v408
                %v410 = vld [vmem:[%s228 + $0x550] sm:$0xff]
                %411 = vst [vmem:[%s229 + $0x2d0] sm:$0xff] %v410
                %v412 = vld [vmem:[%s228 + $0x558] sm:$0xff]
                %413 = vst [vmem:[%s229 + $0x2d8] sm:$0xff] %v412
                %v414 = vld [vmem:[%s228 + $0x560] sm:$0xff]
                %415 = vst [vmem:[%s229 + $0x2e0] sm:$0xff] %v414
                %v416 = vld [vmem:[%s228 + $0x568] sm:$0xff]
                %417 = vst [vmem:[%s229 + $0x2e8] sm:$0xff] %v416
                %v418 = vld [vmem:[%s228 + $0x570] sm:$0xff]
                %419 = vst [vmem:[%s229 + $0x2f0] sm:$0xff] %v418
                %v420 = vld [vmem:[%s228 + $0x578] sm:$0xff]
                %421 = vst [vmem:[%s229 + $0x2f8] sm:$0xff] %v420
                %v422 = vld [vmem:[%s228 + $0x600] sm:$0xff]
                %423 = vst [vmem:[%s229 + $0x300] sm:$0xff] %v422
                %v424 = vld [vmem:[%s228 + $0x608] sm:$0xff]
                %425 = vst [vmem:[%s229 + $0x308] sm:$0xff] %v424
                %v426 = vld [vmem:[%s228 + $0x610] sm:$0xff]
                %427 = vst [vmem:[%s229 + $0x310] sm:$0xff] %v426
                %v428 = vld [vmem:[%s228 + $0x618] sm:$0xff]
                %429 = vst [vmem:[%s229 + $0x318] sm:$0xff] %v428
                %v430 = vld [vmem:[%s228 + $0x620] sm:$0xff]
                %431 = vst [vmem:[%s229 + $0x320] sm:$0xff] %v430
                %v432 = vld [vmem:[%s228 + $0x628] sm:$0xff]
                %433 = vst [vmem:[%s229 + $0x328] sm:$0xff] %v432
                %v434 = vld [vmem:[%s228 + $0x630] sm:$0xff]
                %435 = vst [vmem:[%s229 + $0x330] sm:$0xff] %v434
                %v436 = vld [vmem:[%s228 + $0x638] sm:$0xff]
                %437 = vst [vmem:[%s229 + $0x338] sm:$0xff] %v436
                %v438 = vld [vmem:[%s228 + $0x640] sm:$0xff]
                %439 = vst [vmem:[%s229 + $0x340] sm:$0xff] %v438
                %v440 = vld [vmem:[%s228 + $0x648] sm:$0xff]
                %441 = vst [vmem:[%s229 + $0x348] sm:$0xff] %v440
                %v442 = vld [vmem:[%s228 + $0x650] sm:$0xff]
                %443 = vst [vmem:[%s229 + $0x350] sm:$0xff] %v442
                %v444 = vld [vmem:[%s228 + $0x658] sm:$0xff]
                %445 = vst [vmem:[%s229 + $0x358] sm:$0xff] %v444
                %v446 = vld [vmem:[%s228 + $0x660] sm:$0xff]
                %447 = vst [vmem:[%s229 + $0x360] sm:$0xff] %v446
                %v448 = vld [vmem:[%s228 + $0x668] sm:$0xff]
                %449 = vst [vmem:[%s229 + $0x368] sm:$0xff] %v448
                %v450 = vld [vmem:[%s228 + $0x670] sm:$0xff]
                %451 = vst [vmem:[%s229 + $0x370] sm:$0xff] %v450
                %v452 = vld [vmem:[%s228 + $0x678] sm:$0xff]
                %453 = vst [vmem:[%s229 + $0x378] sm:$0xff] %v452
                %v454 = vld [vmem:[%s228 + $0x700] sm:$0xff]
                %455 = vst [vmem:[%s229 + $0x380] sm:$0xff] %v454
                %v456 = vld [vmem:[%s228 + $0x708] sm:$0xff]
                %457 = vst [vmem:[%s229 + $0x388] sm:$0xff] %v456
                %v458 = vld [vmem:[%s228 + $0x710] sm:$0xff]
                %459 = vst [vmem:[%s229 + $0x390] sm:$0xff] %v458
                %v460 = vld [vmem:[%s228 + $0x718] sm:$0xff]
                %461 = vst [vmem:[%s229 + $0x398] sm:$0xff] %v460
                %v462 = vld [vmem:[%s228 + $0x720] sm:$0xff]
                %463 = vst [vmem:[%s229 + $0x3a0] sm:$0xff] %v462
                %v464 = vld [vmem:[%s228 + $0x728] sm:$0xff]
                %465 = vst [vmem:[%s229 + $0x3a8] sm:$0xff] %v464
                %v466 = vld [vmem:[%s228 + $0x730] sm:$0xff]
                %467 = vst [vmem:[%s229 + $0x3b0] sm:$0xff] %v466
                %v468 = vld [vmem:[%s228 + $0x738] sm:$0xff]
                %469 = vst [vmem:[%s229 + $0x3b8] sm:$0xff] %v468
                %v470 = vld [vmem:[%s228 + $0x740] sm:$0xff]
                %471 = vst [vmem:[%s229 + $0x3c0] sm:$0xff] %v470
                %v472 = vld [vmem:[%s228 + $0x748] sm:$0xff]
                %473 = vst [vmem:[%s229 + $0x3c8] sm:$0xff] %v472
                %v474 = vld [vmem:[%s228 + $0x750] sm:$0xff]
                %475 = vst [vmem:[%s229 + $0x3d0] sm:$0xff] %v474
                %v476 = vld [vmem:[%s228 + $0x758] sm:$0xff]
                %477 = vst [vmem:[%s229 + $0x3d8] sm:$0xff] %v476
                %v478 = vld [vmem:[%s228 + $0x760] sm:$0xff]
                %479 = vst [vmem:[%s229 + $0x3e0] sm:$0xff] %v478
                %v480 = vld [vmem:[%s228 + $0x768] sm:$0xff]
                %481 = vst [vmem:[%s229 + $0x3e8] sm:$0xff] %v480
                %v482 = vld [vmem:[%s228 + $0x770] sm:$0xff]
                %483 = vst [vmem:[%s229 + $0x3f0] sm:$0xff] %v482
                %v484 = vld [vmem:[%s228 + $0x778] sm:$0xff]
                %485 = vst [vmem:[%s229 + $0x3f8] sm:$0xff] %v484
                %v486 = vld [vmem:[%s228 + $0x800] sm:$0xff]
                %487 = vst [vmem:[%s229 + $0x400] sm:$0xff] %v486
                %v488 = vld [vmem:[%s228 + $0x808] sm:$0xff]
                %489 = vst [vmem:[%s229 + $0x408] sm:$0xff] %v488
                %v490 = vld [vmem:[%s228 + $0x810] sm:$0xff]
                %491 = vst [vmem:[%s229 + $0x410] sm:$0xff] %v490
                %v492 = vld [vmem:[%s228 + $0x818] sm:$0xff]
                %493 = vst [vmem:[%s229 + $0x418] sm:$0xff] %v492
                %v494 = vld [vmem:[%s228 + $0x820] sm:$0xff]
                %495 = vst [vmem:[%s229 + $0x420] sm:$0xff] %v494
                %v496 = vld [vmem:[%s228 + $0x828] sm:$0xff]
                %497 = vst [vmem:[%s229 + $0x428] sm:$0xff] %v496
                %v498 = vld [vmem:[%s228 + $0x830] sm:$0xff]
                %499 = vst [vmem:[%s229 + $0x430] sm:$0xff] %v498
                %v500 = vld [vmem:[%s228 + $0x838] sm:$0xff]
                %501 = vst [vmem:[%s229 + $0x438] sm:$0xff] %v500
                %v502 = vld [vmem:[%s228 + $0x840] sm:$0xff]
                %503 = vst [vmem:[%s229 + $0x440] sm:$0xff] %v502
                %v504 = vld [vmem:[%s228 + $0x848] sm:$0xff]
                %505 = vst [vmem:[%s229 + $0x448] sm:$0xff] %v504
                %v506 = vld [vmem:[%s228 + $0x850] sm:$0xff]
                %507 = vst [vmem:[%s229 + $0x450] sm:$0xff] %v506
                %v508 = vld [vmem:[%s228 + $0x858] sm:$0xff]
                %509 = vst [vmem:[%s229 + $0x458] sm:$0xff] %v508
                %v510 = vld [vmem:[%s228 + $0x860] sm:$0xff]
                %511 = vst [vmem:[%s229 + $0x460] sm:$0xff] %v510
                %v512 = vld [vmem:[%s228 + $0x868] sm:$0xff]
                %513 = vst [vmem:[%s229 + $0x468] sm:$0xff] %v512
                %v514 = vld [vmem:[%s228 + $0x870] sm:$0xff]
                %515 = vst [vmem:[%s229 + $0x470] sm:$0xff] %v514
                %v516 = vld [vmem:[%s228 + $0x878] sm:$0xff]
                %517 = vst [vmem:[%s229 + $0x478] sm:$0xff] %v516
                %v518 = vld [vmem:[%s228 + $0x900] sm:$0xff]
                %519 = vst [vmem:[%s229 + $0x480] sm:$0xff] %v518
                %v520 = vld [vmem:[%s228 + $0x908] sm:$0xff]
                %521 = vst [vmem:[%s229 + $0x488] sm:$0xff] %v520
                %v522 = vld [vmem:[%s228 + $0x910] sm:$0xff]
                %523 = vst [vmem:[%s229 + $0x490] sm:$0xff] %v522
                %v524 = vld [vmem:[%s228 + $0x918] sm:$0xff]
                %525 = vst [vmem:[%s229 + $0x498] sm:$0xff] %v524
                %v526 = vld [vmem:[%s228 + $0x920] sm:$0xff]
                %527 = vst [vmem:[%s229 + $0x4a0] sm:$0xff] %v526
                %v528 = vld [vmem:[%s228 + $0x928] sm:$0xff]
                %529 = vst [vmem:[%s229 + $0x4a8] sm:$0xff] %v528
                %v530 = vld [vmem:[%s228 + $0x930] sm:$0xff]
                %531 = vst [vmem:[%s229 + $0x4b0] sm:$0xff] %v530
                %v532 = vld [vmem:[%s228 + $0x938] sm:$0xff]
                %533 = vst [vmem:[%s229 + $0x4b8] sm:$0xff] %v532
                %v534 = vld [vmem:[%s228 + $0x940] sm:$0xff]
                %535 = vst [vmem:[%s229 + $0x4c0] sm:$0xff] %v534
                %v536 = vld [vmem:[%s228 + $0x948] sm:$0xff]
                %537 = vst [vmem:[%s229 + $0x4c8] sm:$0xff] %v536
                %v538 = vld [vmem:[%s228 + $0x950] sm:$0xff]
                %539 = vst [vmem:[%s229 + $0x4d0] sm:$0xff] %v538
                %v540 = vld [vmem:[%s228 + $0x958] sm:$0xff]
                %541 = vst [vmem:[%s229 + $0x4d8] sm:$0xff] %v540
                %v542 = vld [vmem:[%s228 + $0x960] sm:$0xff]
                %543 = vst [vmem:[%s229 + $0x4e0] sm:$0xff] %v542
                %v544 = vld [vmem:[%s228 + $0x968] sm:$0xff]
                %545 = vst [vmem:[%s229 + $0x4e8] sm:$0xff] %v544
                %v546 = vld [vmem:[%s228 + $0x970] sm:$0xff]
                %547 = vst [vmem:[%s229 + $0x4f0] sm:$0xff] %v546
                %v548 = vld [vmem:[%s228 + $0x978] sm:$0xff]
                %549 = vst [vmem:[%s229 + $0x4f8] sm:$0xff] %v548
                %v550 = vld [vmem:[%s228 + $0xa00] sm:$0xff]
                %551 = vst [vmem:[%s229 + $0x500] sm:$0xff] %v550
                %v552 = vld [vmem:[%s228 + $0xa08] sm:$0xff]
                %553 = vst [vmem:[%s229 + $0x508] sm:$0xff] %v552
                %v554 = vld [vmem:[%s228 + $0xa10] sm:$0xff]
                %555 = vst [vmem:[%s229 + $0x510] sm:$0xff] %v554
                %v556 = vld [vmem:[%s228 + $0xa18] sm:$0xff]
                %557 = vst [vmem:[%s229 + $0x518] sm:$0xff] %v556
                %v558 = vld [vmem:[%s228 + $0xa20] sm:$0xff]
                %559 = vst [vmem:[%s229 + $0x520] sm:$0xff] %v558
                %v560 = vld [vmem:[%s228 + $0xa28] sm:$0xff]
                %561 = vst [vmem:[%s229 + $0x528] sm:$0xff] %v560
                %v562 = vld [vmem:[%s228 + $0xa30] sm:$0xff]
                %563 = vst [vmem:[%s229 + $0x530] sm:$0xff] %v562
                %v564 = vld [vmem:[%s228 + $0xa38] sm:$0xff]
                %565 = vst [vmem:[%s229 + $0x538] sm:$0xff] %v564
                %v566 = vld [vmem:[%s228 + $0xa40] sm:$0xff]
                %567 = vst [vmem:[%s229 + $0x540] sm:$0xff] %v566
                %v568 = vld [vmem:[%s228 + $0xa48] sm:$0xff]
                %569 = vst [vmem:[%s229 + $0x548] sm:$0xff] %v568
                %v570 = vld [vmem:[%s228 + $0xa50] sm:$0xff]
                %571 = vst [vmem:[%s229 + $0x550] sm:$0xff] %v570
                %v572 = vld [vmem:[%s228 + $0xa58] sm:$0xff]
                %573 = vst [vmem:[%s229 + $0x558] sm:$0xff] %v572
                %v574 = vld [vmem:[%s228 + $0xa60] sm:$0xff]
                %575 = vst [vmem:[%s229 + $0x560] sm:$0xff] %v574
                %v576 = vld [vmem:[%s228 + $0xa68] sm:$0xff]
                %577 = vst [vmem:[%s229 + $0x568] sm:$0xff] %v576
                %v578 = vld [vmem:[%s228 + $0xa70] sm:$0xff]
                %579 = vst [vmem:[%s229 + $0x570] sm:$0xff] %v578
                %v580 = vld [vmem:[%s228 + $0xa78] sm:$0xff]
                %581 = vst [vmem:[%s229 + $0x578] sm:$0xff] %v580
                %v582 = vld [vmem:[%s228 + $0xb00] sm:$0xff]
                %583 = vst [vmem:[%s229 + $0x580] sm:$0xff] %v582
                %v584 = vld [vmem:[%s228 + $0xb08] sm:$0xff]
                %585 = vst [vmem:[%s229 + $0x588] sm:$0xff] %v584
                %v586 = vld [vmem:[%s228 + $0xb10] sm:$0xff]
                %587 = vst [vmem:[%s229 + $0x590] sm:$0xff] %v586
                %v588 = vld [vmem:[%s228 + $0xb18] sm:$0xff]
                %589 = vst [vmem:[%s229 + $0x598] sm:$0xff] %v588
                %v590 = vld [vmem:[%s228 + $0xb20] sm:$0xff]
                %591 = vst [vmem:[%s229 + $0x5a0] sm:$0xff] %v590
                %v592 = vld [vmem:[%s228 + $0xb28] sm:$0xff]
                %593 = vst [vmem:[%s229 + $0x5a8] sm:$0xff] %v592
                %v594 = vld [vmem:[%s228 + $0xb30] sm:$0xff]
                %595 = vst [vmem:[%s229 + $0x5b0] sm:$0xff] %v594
                %v596 = vld [vmem:[%s228 + $0xb38] sm:$0xff]
                %597 = vst [vmem:[%s229 + $0x5b8] sm:$0xff] %v596
                %v598 = vld [vmem:[%s228 + $0xb40] sm:$0xff]
                %599 = vst [vmem:[%s229 + $0x5c0] sm:$0xff] %v598
                %v600 = vld [vmem:[%s228 + $0xb48] sm:$0xff]
                %601 = vst [vmem:[%s229 + $0x5c8] sm:$0xff] %v600
                %v602 = vld [vmem:[%s228 + $0xb50] sm:$0xff]
                %603 = vst [vmem:[%s229 + $0x5d0] sm:$0xff] %v602
                %v604 = vld [vmem:[%s228 + $0xb58] sm:$0xff]
                %605 = vst [vmem:[%s229 + $0x5d8] sm:$0xff] %v604
                %v606 = vld [vmem:[%s228 + $0xb60] sm:$0xff]
                %607 = vst [vmem:[%s229 + $0x5e0] sm:$0xff] %v606
                %v608 = vld [vmem:[%s228 + $0xb68] sm:$0xff]
                %609 = vst [vmem:[%s229 + $0x5e8] sm:$0xff] %v608
                %v610 = vld [vmem:[%s228 + $0xb70] sm:$0xff]
                %611 = vst [vmem:[%s229 + $0x5f0] sm:$0xff] %v610
                %v612 = vld [vmem:[%s228 + $0xb78] sm:$0xff]
                %613 = vst [vmem:[%s229 + $0x5f8] sm:$0xff] %v612
                %v614 = vld [vmem:[%s228 + $0xc00] sm:$0xff]
                %615 = vst [vmem:[%s229 + $0x600] sm:$0xff] %v614
                %v616 = vld [vmem:[%s228 + $0xc08] sm:$0xff]
                %617 = vst [vmem:[%s229 + $0x608] sm:$0xff] %v616
                %v618 = vld [vmem:[%s228 + $0xc10] sm:$0xff]
                %619 = vst [vmem:[%s229 + $0x610] sm:$0xff] %v618
                %v620 = vld [vmem:[%s228 + $0xc18] sm:$0xff]
                %621 = vst [vmem:[%s229 + $0x618] sm:$0xff] %v620
                %v622 = vld [vmem:[%s228 + $0xc20] sm:$0xff]
                %623 = vst [vmem:[%s229 + $0x620] sm:$0xff] %v622
                %v624 = vld [vmem:[%s228 + $0xc28] sm:$0xff]
                %625 = vst [vmem:[%s229 + $0x628] sm:$0xff] %v624
                %v626 = vld [vmem:[%s228 + $0xc30] sm:$0xff]
                %627 = vst [vmem:[%s229 + $0x630] sm:$0xff] %v626
                %v628 = vld [vmem:[%s228 + $0xc38] sm:$0xff]
                %629 = vst [vmem:[%s229 + $0x638] sm:$0xff] %v628
                %v630 = vld [vmem:[%s228 + $0xc40] sm:$0xff]
                %631 = vst [vmem:[%s229 + $0x640] sm:$0xff] %v630
                %v632 = vld [vmem:[%s228 + $0xc48] sm:$0xff]
                %633 = vst [vmem:[%s229 + $0x648] sm:$0xff] %v632
                %v634 = vld [vmem:[%s228 + $0xc50] sm:$0xff]
                %635 = vst [vmem:[%s229 + $0x650] sm:$0xff] %v634
                %v636 = vld [vmem:[%s228 + $0xc58] sm:$0xff]
                %637 = vst [vmem:[%s229 + $0x658] sm:$0xff] %v636
                %v638 = vld [vmem:[%s228 + $0xc60] sm:$0xff]
                %639 = vst [vmem:[%s229 + $0x660] sm:$0xff] %v638
                %v640 = vld [vmem:[%s228 + $0xc68] sm:$0xff]
                %641 = vst [vmem:[%s229 + $0x668] sm:$0xff] %v640
                %v642 = vld [vmem:[%s228 + $0xc70] sm:$0xff]
                %643 = vst [vmem:[%s229 + $0x670] sm:$0xff] %v642
                %v644 = vld [vmem:[%s228 + $0xc78] sm:$0xff]
                %645 = vst [vmem:[%s229 + $0x678] sm:$0xff] %v644
                %v646 = vld [vmem:[%s228 + $0xd00] sm:$0xff]
                %647 = vst [vmem:[%s229 + $0x680] sm:$0xff] %v646
                %v648 = vld [vmem:[%s228 + $0xd08] sm:$0xff]
                %649 = vst [vmem:[%s229 + $0x688] sm:$0xff] %v648
                %v650 = vld [vmem:[%s228 + $0xd10] sm:$0xff]
                %651 = vst [vmem:[%s229 + $0x690] sm:$0xff] %v650
                %v652 = vld [vmem:[%s228 + $0xd18] sm:$0xff]
                %653 = vst [vmem:[%s229 + $0x698] sm:$0xff] %v652
                %v654 = vld [vmem:[%s228 + $0xd20] sm:$0xff]
                %655 = vst [vmem:[%s229 + $0x6a0] sm:$0xff] %v654
                %v656 = vld [vmem:[%s228 + $0xd28] sm:$0xff]
                %657 = vst [vmem:[%s229 + $0x6a8] sm:$0xff] %v656
                %v658 = vld [vmem:[%s228 + $0xd30] sm:$0xff]
                %659 = vst [vmem:[%s229 + $0x6b0] sm:$0xff] %v658
                %v660 = vld [vmem:[%s228 + $0xd38] sm:$0xff]
                %661 = vst [vmem:[%s229 + $0x6b8] sm:$0xff] %v660
                %v662 = vld [vmem:[%s228 + $0xd40] sm:$0xff]
                %663 = vst [vmem:[%s229 + $0x6c0] sm:$0xff] %v662
                %v664 = vld [vmem:[%s228 + $0xd48] sm:$0xff]
                %665 = vst [vmem:[%s229 + $0x6c8] sm:$0xff] %v664
                %v666 = vld [vmem:[%s228 + $0xd50] sm:$0xff]
                %667 = vst [vmem:[%s229 + $0x6d0] sm:$0xff] %v666
                %v668 = vld [vmem:[%s228 + $0xd58] sm:$0xff]
                %669 = vst [vmem:[%s229 + $0x6d8] sm:$0xff] %v668
                %v670 = vld [vmem:[%s228 + $0xd60] sm:$0xff]
                %671 = vst [vmem:[%s229 + $0x6e0] sm:$0xff] %v670
                %v672 = vld [vmem:[%s228 + $0xd68] sm:$0xff]
                %673 = vst [vmem:[%s229 + $0x6e8] sm:$0xff] %v672
                %v674 = vld [vmem:[%s228 + $0xd70] sm:$0xff]
                %675 = vst [vmem:[%s229 + $0x6f0] sm:$0xff] %v674
                %v676 = vld [vmem:[%s228 + $0xd78] sm:$0xff]
                %677 = vst [vmem:[%s229 + $0x6f8] sm:$0xff] %v676
              $region41: #{tpu_custom_call.1} parent=35 // loop_footer
                %s227 = sadd.s32 1, %s223
              $region42: #{tpu_custom_call.1} parent=35 // loop_footer_branch
                %222 = sbr.rel target = $region38
              $region43: #{tpu_custom_call.1} parent=35 // loop_exit
                _
            $region36: #{tpu_custom_call.1} parent=31 // pred_fallthru
              _
            // Predicated region
            $region44: #{tpu_custom_call.1} parent=31 // pred_check
              _
            $region45: #{tpu_custom_call.1} parent=31 // pred_check_branch
              %679 = sbr.rel target = $region47
            $region46: #{tpu_custom_call.1} parent=31 // pred_region
              _
            $region47: #{tpu_custom_call.1} parent=31 // pred_fallthru
              _
          $region32: #{tpu_custom_call.1} parent=27 // pred_fallthru
            _
          %680 = vnop
        $region28: #{tpu_custom_call.1} parent=23 // pred_fallthru
          _
      $region24: #{tpu_custom_call.1} parent=5 // pred_fallthru
        _
      %p681 = scmp.le.s32.totalorder 1, %s15
      %p682 = scmp.lt.s32.totalorder %s15, 5
      %p683 = pnand %p681, %p682
      %p684 = pneg %p683
      // Predicated region
      $region48: #{tpu_custom_call.1} parent=5 // pred_check
        _
      $region49: #{tpu_custom_call.1} parent=5 // pred_check_branch
        %686 = sbr.rel (%p683) target = $region51
      $region50: #{tpu_custom_call.1} parent=5 // pred_region
        %s687 = ssub.s32 %s15, 1
        %s688 = sand.u32 %s42, 1
        %s689 = sand.u32 %s42, 1
        %s690 = smul.addr %s689, 1792
        %s691 = scalar_lea.vmem [#allocation2], %s690
        // Predicated region
        $region52: #{tpu_custom_call.1} parent=50 // pred_check
          %p692 = pneg %p55
        $region53: #{tpu_custom_call.1} parent=50 // pred_check_branch
          %694 = sbr.rel (%p692) target = $region55
        $region54: #{tpu_custom_call.1} parent=50 // pred_region
          _
        $region55: #{tpu_custom_call.1} parent=50 // pred_fallthru
          _
        %s695 = sand.u32 %s42, 1
        %s696 = sand.u32 %s42, 1
        %s697 = smul.addr %s696, 1792
        %s698 = scalar_lea.vmem [#allocation2], %s697
        %p699 = pneg %p55
        %p700 = pneg %p52
        %p701 = pneg %p76
        %p702 = pneg %p73
        %p703 = pneg %p97
        %p704 = pneg %p94
        %p705 = pneg %p125
        %p706 = pneg %p122
        %s707 = sand.u32 %s112, 1
        %s708 = scalar_lea.sflag [#allocation4], %s707
        %s709 = sand.u32 %s112, 1
        %s710 = smul.addr %s709, 128
        %s711 = scalar_lea.vmem [#allocation3], %s710
        %p712 = pneg %p153
        %p713 = pneg %p150
        %p714 = scmp.lt.s32.totalorder %s24, 1
        %s715 = scalar_select %p714, %s24, 1
        %p716 = scmp.lt.s32.totalorder %s25, 1
        %s717 = scalar_select %p716, %s25, 1
        %s718 = smul.addr %s715, 2
        %s719 = sadd.s32 %s717, %s718
        %s720 = smul.addr %s719, 8
        %s721 = scalar_lea.vmem %s4, %s720
        %p722 = pneg %p181
        %p723 = pneg %p178
        %p724 = scmp.lt.s32.totalorder %s24, 1
        %s725 = scalar_select %p724, %s24, 1
        %p726 = scmp.lt.s32.totalorder %s25, 1
        %s727 = scalar_select %p726, %s25, 1
        %s728 = smul.addr %s725, 2
        %s729 = sadd.s32 %s727, %s728
        %s730 = smul.addr %s729, 8
        %s731 = scalar_lea.vmem %s5, %s730
        %s732 = smul.u32 16, %s25
        %s733 = smul.u32 16, %s25
        %p734 = scmp.lt.s32.totalorder %s24, 1
        %s735 = scalar_select %p734, %s24, 1
        %p736 = scmp.lt.s32.totalorder %s25, 1
        %s737 = scalar_select %p736, %s25, 1
        %s738 = smul.addr %s735, 2
        %s739 = sadd.s32 %s737, %s738
        %s740 = smul.addr %s739, 8
        %s741 = scalar_lea.vmem %s4, %s740
        %p742 = scmp.lt.s32.totalorder %s24, 1
        %s743 = scalar_select %p742, %s24, 1
        %p744 = scmp.lt.s32.totalorder %s25, 1
        %s745 = scalar_select %p744, %s25, 1
        %s746 = smul.addr %s743, 2
        %s747 = sadd.s32 %s745, %s746
        %s748 = smul.addr %s747, 8
        %s749 = scalar_lea.vmem %s5, %s748
        %v750 = vld [vmem:[%s1] sm:$0xff]
        %v751 = vld [vmem:[%s691] sm:$0xff]
        %v752 = vld [vmem:[%s691 + $0x8] sm:$0xff]
        %v753 = vld [vmem:[%s691 + $0x10] sm:$0xff]
        %v754 = vld [vmem:[%s691 + $0x18] sm:$0xff]
        %v755 = vld [vmem:[%s691 + $0x20] sm:$0xff]
        %v756 = vld [vmem:[%s691 + $0x28] sm:$0xff]
        %v757 = vld [vmem:[%s691 + $0x30] sm:$0xff]
        %v758 = vld [vmem:[%s691 + $0x38] sm:$0xff]
        %v759 = vld [vmem:[%s691 + $0x40] sm:$0xff]
        %v760 = vld [vmem:[%s691 + $0x48] sm:$0xff]
        %v761 = vld [vmem:[%s691 + $0x50] sm:$0xff]
        %v762 = vld [vmem:[%s691 + $0x58] sm:$0xff]
        %v763 = vld [vmem:[%s691 + $0x60] sm:$0xff]
        %v764 = vld [vmem:[%s691 + $0x68] sm:$0xff]
        %v765 = vld [vmem:[%s691 + $0x70] sm:$0xff]
        %v766 = vld [vmem:[%s691 + $0x78] sm:$0xff]
        %v767 = vld [vmem:[%s691 + $0x80] sm:$0xff]
        %v768 = vld [vmem:[%s691 + $0x88] sm:$0xff]
        %v769 = vld [vmem:[%s691 + $0x90] sm:$0xff]
        %v770 = vld [vmem:[%s691 + $0x98] sm:$0xff]
        %v771 = vld [vmem:[%s691 + $0xa0] sm:$0xff]
        %v772 = vld [vmem:[%s691 + $0xa8] sm:$0xff]
        %v773 = vld [vmem:[%s691 + $0xb0] sm:$0xff]
        %v774 = vld [vmem:[%s691 + $0xb8] sm:$0xff]
        %v775 = vld [vmem:[%s691 + $0xc0] sm:$0xff]
        %v776 = vld [vmem:[%s691 + $0xc8] sm:$0xff]
        %v777 = vld [vmem:[%s691 + $0xd0] sm:$0xff]
        %v778 = vld [vmem:[%s691 + $0xd8] sm:$0xff]
        %v779 = vld [vmem:[%s691 + $0xe0] sm:$0xff]
        %v780 = vld [vmem:[%s691 + $0xe8] sm:$0xff]
        %v781 = vld [vmem:[%s691 + $0xf0] sm:$0xff]
        %v782 = vld [vmem:[%s691 + $0xf8] sm:$0xff]
        %v783 = vld [vmem:[%s691 + $0x100] sm:$0xff]
        %v784 = vld [vmem:[%s691 + $0x108] sm:$0xff]
        %v785 = vld [vmem:[%s691 + $0x110] sm:$0xff]
        %v786 = vld [vmem:[%s691 + $0x118] sm:$0xff]
        %v787 = vld [vmem:[%s691 + $0x120] sm:$0xff]
        %v788 = vld [vmem:[%s691 + $0x128] sm:$0xff]
        %v789 = vld [vmem:[%s691 + $0x130] sm:$0xff]
        %v790 = vld [vmem:[%s691 + $0x138] sm:$0xff]
        %v791 = vld [vmem:[%s691 + $0x140] sm:$0xff]
        %v792 = vld [vmem:[%s691 + $0x148] sm:$0xff]
        %v793 = vld [vmem:[%s691 + $0x150] sm:$0xff]
        %v794 = vld [vmem:[%s691 + $0x158] sm:$0xff]
        %v795 = vld [vmem:[%s691 + $0x160] sm:$0xff]
        %v796 = vld [vmem:[%s691 + $0x168] sm:$0xff]
        %v797 = vld [vmem:[%s691 + $0x170] sm:$0xff]
        %v798 = vld [vmem:[%s691 + $0x178] sm:$0xff]
        %v799 = vld [vmem:[%s691 + $0x180] sm:$0xff]
        %v800 = vld [vmem:[%s691 + $0x188] sm:$0xff]
        %v801 = vld [vmem:[%s691 + $0x190] sm:$0xff]
        %v802 = vld [vmem:[%s691 + $0x198] sm:$0xff]
        %v803 = vld [vmem:[%s691 + $0x1a0] sm:$0xff]
        %v804 = vld [vmem:[%s691 + $0x1a8] sm:$0xff]
        %v805 = vld [vmem:[%s691 + $0x1b0] sm:$0xff]
        %v806 = vld [vmem:[%s691 + $0x1b8] sm:$0xff]
        %v807 = vld [vmem:[%s691 + $0x1c0] sm:$0xff]
        %v808 = vld [vmem:[%s691 + $0x1c8] sm:$0xff]
        %v809 = vld [vmem:[%s691 + $0x1d0] sm:$0xff]
        %v810 = vld [vmem:[%s691 + $0x1d8] sm:$0xff]
        %v811 = vld [vmem:[%s691 + $0x1e0] sm:$0xff]
        %v812 = vld [vmem:[%s691 + $0x1e8] sm:$0xff]
        %v813 = vld [vmem:[%s691 + $0x1f0] sm:$0xff]
        %v814 = vld [vmem:[%s691 + $0x1f8] sm:$0xff]
        %v815 = vld [vmem:[%s691 + $0x200] sm:$0xff]
        %v816 = vld [vmem:[%s691 + $0x208] sm:$0xff]
        %v817 = vld [vmem:[%s691 + $0x210] sm:$0xff]
        %v818 = vld [vmem:[%s691 + $0x218] sm:$0xff]
        %v819 = vld [vmem:[%s691 + $0x220] sm:$0xff]
        %v820 = vld [vmem:[%s691 + $0x228] sm:$0xff]
        %v821 = vld [vmem:[%s691 + $0x230] sm:$0xff]
        %v822 = vld [vmem:[%s691 + $0x238] sm:$0xff]
        %v823 = vld [vmem:[%s691 + $0x240] sm:$0xff]
        %v824 = vld [vmem:[%s691 + $0x248] sm:$0xff]
        %v825 = vld [vmem:[%s691 + $0x250] sm:$0xff]
        %v826 = vld [vmem:[%s691 + $0x258] sm:$0xff]
        %v827 = vld [vmem:[%s691 + $0x260] sm:$0xff]
        %v828 = vld [vmem:[%s691 + $0x268] sm:$0xff]
        %v829 = vld [vmem:[%s691 + $0x270] sm:$0xff]
        %v830 = vld [vmem:[%s691 + $0x278] sm:$0xff]
        %v831 = vld [vmem:[%s691 + $0x280] sm:$0xff]
        %v832 = vld [vmem:[%s691 + $0x288] sm:$0xff]
        %v833 = vld [vmem:[%s691 + $0x290] sm:$0xff]
        %v834 = vld [vmem:[%s691 + $0x298] sm:$0xff]
        %v835 = vld [vmem:[%s691 + $0x2a0] sm:$0xff]
        %v836 = vld [vmem:[%s691 + $0x2a8] sm:$0xff]
        %v837 = vld [vmem:[%s691 + $0x2b0] sm:$0xff]
        %v838 = vld [vmem:[%s691 + $0x2b8] sm:$0xff]
        %v839 = vld [vmem:[%s691 + $0x2c0] sm:$0xff]
        %v840 = vld [vmem:[%s691 + $0x2c8] sm:$0xff]
        %v841 = vld [vmem:[%s691 + $0x2d0] sm:$0xff]
        %v842 = vld [vmem:[%s691 + $0x2d8] sm:$0xff]
        %v843 = vld [vmem:[%s691 + $0x2e0] sm:$0xff]
        %v844 = vld [vmem:[%s691 + $0x2e8] sm:$0xff]
        %v845 = vld [vmem:[%s691 + $0x2f0] sm:$0xff]
        %v846 = vld [vmem:[%s691 + $0x2f8] sm:$0xff]
        %v847 = vld [vmem:[%s691 + $0x300] sm:$0xff]
        %v848 = vld [vmem:[%s691 + $0x308] sm:$0xff]
        %v849 = vld [vmem:[%s691 + $0x310] sm:$0xff]
        %v850 = vld [vmem:[%s691 + $0x318] sm:$0xff]
        %v851 = vld [vmem:[%s691 + $0x320] sm:$0xff]
        %v852 = vld [vmem:[%s691 + $0x328] sm:$0xff]
        %v853 = vld [vmem:[%s691 + $0x330] sm:$0xff]
        %v854 = vld [vmem:[%s691 + $0x338] sm:$0xff]
        %v855 = vld [vmem:[%s691 + $0x340] sm:$0xff]
        %v856 = vld [vmem:[%s691 + $0x348] sm:$0xff]
        %v857 = vld [vmem:[%s691 + $0x350] sm:$0xff]
        %v858 = vld [vmem:[%s691 + $0x358] sm:$0xff]
        %v859 = vld [vmem:[%s691 + $0x360] sm:$0xff]
        %v860 = vld [vmem:[%s691 + $0x368] sm:$0xff]
        %v861 = vld [vmem:[%s691 + $0x370] sm:$0xff]
        %v862 = vld [vmem:[%s691 + $0x378] sm:$0xff]
        %v863 = vld [vmem:[%s691 + $0x380] sm:$0xff]
        %v864 = vld [vmem:[%s691 + $0x388] sm:$0xff]
        %v865 = vld [vmem:[%s691 + $0x390] sm:$0xff]
        %v866 = vld [vmem:[%s691 + $0x398] sm:$0xff]
        %v867 = vld [vmem:[%s691 + $0x3a0] sm:$0xff]
        %v868 = vld [vmem:[%s691 + $0x3a8] sm:$0xff]
        %v869 = vld [vmem:[%s691 + $0x3b0] sm:$0xff]
        %v870 = vld [vmem:[%s691 + $0x3b8] sm:$0xff]
        %v871 = vld [vmem:[%s691 + $0x3c0] sm:$0xff]
        %v872 = vld [vmem:[%s691 + $0x3c8] sm:$0xff]
        %v873 = vld [vmem:[%s691 + $0x3d0] sm:$0xff]
        %v874 = vld [vmem:[%s691 + $0x3d8] sm:$0xff]
        %v875 = vld [vmem:[%s691 + $0x3e0] sm:$0xff]
        %v876 = vld [vmem:[%s691 + $0x3e8] sm:$0xff]
        %v877 = vld [vmem:[%s691 + $0x3f0] sm:$0xff]
        %v878 = vld [vmem:[%s691 + $0x3f8] sm:$0xff]
        %v879 = vld [vmem:[%s691 + $0x400] sm:$0xff]
        %v880 = vld [vmem:[%s691 + $0x408] sm:$0xff]
        %v881 = vld [vmem:[%s691 + $0x410] sm:$0xff]
        %v882 = vld [vmem:[%s691 + $0x418] sm:$0xff]
        %v883 = vld [vmem:[%s691 + $0x420] sm:$0xff]
        %v884 = vld [vmem:[%s691 + $0x428] sm:$0xff]
        %v885 = vld [vmem:[%s691 + $0x430] sm:$0xff]
        %v886 = vld [vmem:[%s691 + $0x438] sm:$0xff]
        %v887 = vld [vmem:[%s691 + $0x440] sm:$0xff]
        %v888 = vld [vmem:[%s691 + $0x448] sm:$0xff]
        %v889 = vld [vmem:[%s691 + $0x450] sm:$0xff]
        %v890 = vld [vmem:[%s691 + $0x458] sm:$0xff]
        %v891 = vld [vmem:[%s691 + $0x460] sm:$0xff]
        %v892 = vld [vmem:[%s691 + $0x468] sm:$0xff]
        %v893 = vld [vmem:[%s691 + $0x470] sm:$0xff]
        %v894 = vld [vmem:[%s691 + $0x478] sm:$0xff]
        %v895 = vld [vmem:[%s691 + $0x480] sm:$0xff]
        %v896 = vld [vmem:[%s691 + $0x488] sm:$0xff]
        %v897 = vld [vmem:[%s691 + $0x490] sm:$0xff]
        %v898 = vld [vmem:[%s691 + $0x498] sm:$0xff]
        %v899 = vld [vmem:[%s691 + $0x4a0] sm:$0xff]
        %v900 = vld [vmem:[%s691 + $0x4a8] sm:$0xff]
        %v901 = vld [vmem:[%s691 + $0x4b0] sm:$0xff]
        %v902 = vld [vmem:[%s691 + $0x4b8] sm:$0xff]
        %v903 = vld [vmem:[%s691 + $0x4c0] sm:$0xff]
        %v904 = vld [vmem:[%s691 + $0x4c8] sm:$0xff]
        %v905 = vld [vmem:[%s691 + $0x4d0] sm:$0xff]
        %v906 = vld [vmem:[%s691 + $0x4d8] sm:$0xff]
        %v907 = vld [vmem:[%s691 + $0x4e0] sm:$0xff]
        %v908 = vld [vmem:[%s691 + $0x4e8] sm:$0xff]
        %v909 = vld [vmem:[%s691 + $0x4f0] sm:$0xff]
        %v910 = vld [vmem:[%s691 + $0x4f8] sm:$0xff]
        %v911 = vld [vmem:[%s691 + $0x500] sm:$0xff]
        %v912 = vld [vmem:[%s691 + $0x508] sm:$0xff]
        %v913 = vld [vmem:[%s691 + $0x510] sm:$0xff]
        %v914 = vld [vmem:[%s691 + $0x518] sm:$0xff]
        %v915 = vld [vmem:[%s691 + $0x520] sm:$0xff]
        %v916 = vld [vmem:[%s691 + $0x528] sm:$0xff]
        %v917 = vld [vmem:[%s691 + $0x530] sm:$0xff]
        %v918 = vld [vmem:[%s691 + $0x538] sm:$0xff]
        %v919 = vld [vmem:[%s691 + $0x540] sm:$0xff]
        %v920 = vld [vmem:[%s691 + $0x548] sm:$0xff]
        %v921 = vld [vmem:[%s691 + $0x550] sm:$0xff]
        %v922 = vld [vmem:[%s691 + $0x558] sm:$0xff]
        %v923 = vld [vmem:[%s691 + $0x560] sm:$0xff]
        %v924 = vld [vmem:[%s691 + $0x568] sm:$0xff]
        %v925 = vld [vmem:[%s691 + $0x570] sm:$0xff]
        %v926 = vld [vmem:[%s691 + $0x578] sm:$0xff]
        %v927 = vld [vmem:[%s691 + $0x580] sm:$0xff]
        %v928 = vld [vmem:[%s691 + $0x588] sm:$0xff]
        %v929 = vld [vmem:[%s691 + $0x590] sm:$0xff]
        %v930 = vld [vmem:[%s691 + $0x598] sm:$0xff]
        %v931 = vld [vmem:[%s691 + $0x5a0] sm:$0xff]
        %v932 = vld [vmem:[%s691 + $0x5a8] sm:$0xff]
        %v933 = vld [vmem:[%s691 + $0x5b0] sm:$0xff]
        %v934 = vld [vmem:[%s691 + $0x5b8] sm:$0xff]
        %v935 = vld [vmem:[%s691 + $0x5c0] sm:$0xff]
        %v936 = vld [vmem:[%s691 + $0x5c8] sm:$0xff]
        %v937 = vld [vmem:[%s691 + $0x5d0] sm:$0xff]
        %v938 = vld [vmem:[%s691 + $0x5d8] sm:$0xff]
        %v939 = vld [vmem:[%s691 + $0x5e0] sm:$0xff]
        %v940 = vld [vmem:[%s691 + $0x5e8] sm:$0xff]
        %v941 = vld [vmem:[%s691 + $0x5f0] sm:$0xff]
        %v942 = vld [vmem:[%s691 + $0x5f8] sm:$0xff]
        %v943 = vld [vmem:[%s691 + $0x600] sm:$0xff]
        %v944 = vld [vmem:[%s691 + $0x608] sm:$0xff]
        %v945 = vld [vmem:[%s691 + $0x610] sm:$0xff]
        %v946 = vld [vmem:[%s691 + $0x618] sm:$0xff]
        %v947 = vld [vmem:[%s691 + $0x620] sm:$0xff]
        %v948 = vld [vmem:[%s691 + $0x628] sm:$0xff]
        %v949 = vld [vmem:[%s691 + $0x630] sm:$0xff]
        %v950 = vld [vmem:[%s691 + $0x638] sm:$0xff]
        %v951 = vld [vmem:[%s691 + $0x640] sm:$0xff]
        %v952 = vld [vmem:[%s691 + $0x648] sm:$0xff]
        %v953 = vld [vmem:[%s691 + $0x650] sm:$0xff]
        %v954 = vld [vmem:[%s691 + $0x658] sm:$0xff]
        %v955 = vld [vmem:[%s691 + $0x660] sm:$0xff]
        %v956 = vld [vmem:[%s691 + $0x668] sm:$0xff]
        %v957 = vld [vmem:[%s691 + $0x670] sm:$0xff]
        %v958 = vld [vmem:[%s691 + $0x678] sm:$0xff]
        %v959 = vld [vmem:[%s691 + $0x680] sm:$0xf]
        %v960 = vld [vmem:[%s691 + $0x688] sm:$0xf]
        %v961 = vld [vmem:[%s691 + $0x690] sm:$0xf]
        %v962 = vld [vmem:[%s691 + $0x698] sm:$0xf]
        %v963 = vld [vmem:[%s691 + $0x6a0] sm:$0xf]
        %v964 = vld [vmem:[%s691 + $0x6a8] sm:$0xf]
        %v965 = vld [vmem:[%s691 + $0x6b0] sm:$0xf]
        %v966 = vld [vmem:[%s691 + $0x6b8] sm:$0xf]
        %v967 = vld [vmem:[%s691 + $0x6c0] sm:$0xf]
        %v968 = vld [vmem:[%s691 + $0x6c8] sm:$0xf]
        %v969 = vld [vmem:[%s691 + $0x6d0] sm:$0xf]
        %v970 = vld [vmem:[%s691 + $0x6d8] sm:$0xf]
        %v971 = vld [vmem:[%s691 + $0x6e0] sm:$0xf]
        %v972 = vld [vmem:[%s691 + $0x6e8] sm:$0xf]
        %v973 = vld [vmem:[%s691 + $0x6f0] sm:$0xf]
        %v974 = vld [vmem:[%s691 + $0x6f8] sm:$0xf]
        %v975 = vld [vmem:[%s2] sm:$0xff]
        %977 = vset.pattern.permute.xlu0 0
        %978 = vperm.xlu0 %977, %v975
        %v979 = vpop.permute.xlu0 %978
        %vm981 = vcmask 883712
        %v983 = vsel %vm981, %v750, 0
        %vm985 = vcmask 1043456
        %v987 = vsel %vm985, %v959, 0
        %v990 = vsel %vm985, %v960, 0
        %v993 = vsel %vm985, %v961, 0
        %v996 = vsel %vm985, %v962, 0
        %v999 = vsel %vm985, %v963, 0
        %v1002 = vsel %vm985, %v964, 0
        %v1005 = vsel %vm985, %v965, 0
        %v1008 = vsel %vm985, %v966, 0
        %v1011 = vsel %vm985, %v967, 0
        %v1014 = vsel %vm985, %v968, 0
        %v1017 = vsel %vm985, %v969, 0
        %v1020 = vsel %vm985, %v970, 0
        %v1023 = vsel %vm985, %v971, 0
        %v1026 = vsel %vm985, %v972, 0
        %v1029 = vsel %vm985, %v973, 0
        %v1032 = vsel %vm985, %v974, 0
        %1034 = vmatprep.subr.mxu0 %v752
        %1035 = vmatpush1.msra.mxu0 %v751
        %1036 = vmatprep.subr.mxu0 %v768
        %1037 = vmatpush1.msra.mxu0 %v767
        %1038 = vmatprep.subr.mxu0 %v784
        %1039 = vmatpush1.msra.mxu0 %v783
        %1040 = vmatprep.subr.mxu0 %v800
        %1041 = vmatpush1.msra.mxu0 %v799
        %1042 = vmatprep.subr.mxu0 %v816
        %1043 = vmatpush1.msra.mxu0 %v815
        %1044 = vmatprep.subr.mxu0 %v832
        %1045 = vmatpush1.msra.mxu0 %v831
        %1046 = vmatprep.subr.mxu0 %v848
        %1047 = vmatpush1.msra.mxu0 %v847
        %1048 = vmatprep.subr.mxu0 %v864
        %1049 = vmatpush1.msra.mxu0 %v863
        %1050 = vmatprep.subr.mxu0 %v880
        %1051 = vmatpush1.msra.mxu0 %v879
        %1052 = vmatprep.subr.mxu0 %v896
        %1053 = vmatpush1.msra.mxu0 %v895
        %1054 = vmatprep.subr.mxu0 %v912
        %1055 = vmatpush1.msra.mxu0 %v911
        %1056 = vmatprep.subr.mxu0 %v928
        %1057 = vmatpush1.msra.mxu0 %v927
        %1058 = vmatprep.subr.mxu0 %v944
        %1059 = vmatpush1.msra.mxu0 %v943
        %1060 = vmatprep.subr.mxu0 %v990
        %1061 = vmatpush1.msra.mxu0 %v987
        %1062 = vmatprep.subr.mxu0 0.0
        %1063 = vmatpush1.msra.mxu0 0.0
        %1064 = vmatprep.subr.mxu0 0.0
        %1065 = vmatpush1.msra.mxu0 0.0
        %1066 = vmatprep.subr.mxu0 0.0
        %1067 = vmatpush1.msra.mxu0 0.0
        %1068 = vmatprep.subr.mxu0 0.0
        %1069 = vmatpush1.msra.mxu0 0.0
        %1070 = vmatprep.subr.mxu0 0.0
        %1071 = vmatpush1.msra.mxu0 0.0
        %1072 = vmatprep.subr.mxu0 0.0
        %1073 = vmatpush1.msra.mxu0 0.0
        %1074 = vmatprep.subr.mxu0 0.0
        %1075 = vmatpush1.msra.mxu0 0.0
        %1076 = vmatprep.subr.mxu0 0.0
        %1077 = vmatpush1.msra.mxu0 0.0
        %1078 = vmatprep.subr.mxu0 0.0
        %1079 = vmatpush1.msra.mxu0 0.0
        %1080 = vmatprep.subr.mxu0 0.0
        %1081 = vmatpush1.msra.mxu0 0.0
        %1082 = vmatprep.subr.mxu0 0.0
        %1083 = vmatpush1.msra.mxu0 0.0
        %1084 = vmatprep.subr.mxu0 0.0
        %1085 = vmatpush1.msra.mxu0 0.0
        %1086 = vmatprep.subr.mxu0 0.0
        %1087 = vmatpush1.msra.mxu0 0.0
        %1088 = vmatprep.subr.mxu0 0.0
        %1089 = vmatpush1.msra.mxu0 0.0
        %1090 = vmatprep.subr.mxu0 0.0
        %1091 = vmatpush1.msra.mxu0 0.0
        %1092 = vmatprep.subr.mxu0 0.0
        %1093 = vmatpush1.msra.mxu0 0.0
        %1094 = vmatprep.subr.mxu0 0.0
        %1095 = vmatpush1.msra.mxu0 0.0
        %1096 = vmatprep.subr.mxu0 0.0
        %1097 = vmatpush1.msra.mxu0 0.0
        %1098 = vmatprep.mubr.f32.mxu0 0.0
        %1099 = vmatmul.mubr.f32.gmra.mrb[0].mxu0 %v983
        %v1100 = vpop.f32.mrb[0].mxu0
        %v1101 = vadd.f32 %v979, %v1100
        %v1102 = vpop.f32.mrb[0].mxu0
        %v1103 = vadd.f32 %v979, %v1102
        %1104 = vdwg.mxu0
        %1105 = vmatprep.subr.mxu0 %v754
        %1106 = vmatpush1.msra.mxu0 %v753
        %1107 = vmatprep.subr.mxu0 %v770
        %1108 = vmatpush1.msra.mxu0 %v769
        %1109 = vmatprep.subr.mxu0 %v786
        %1110 = vmatpush1.msra.mxu0 %v785
        %1111 = vmatprep.subr.mxu0 %v802
        %1112 = vmatpush1.msra.mxu0 %v801
        %1113 = vmatprep.subr.mxu0 %v818
        %1114 = vmatpush1.msra.mxu0 %v817
        %1115 = vmatprep.subr.mxu0 %v834
        %1116 = vmatpush1.msra.mxu0 %v833
        %1117 = vmatprep.subr.mxu0 %v850
        %1118 = vmatpush1.msra.mxu0 %v849
        %1119 = vmatprep.subr.mxu0 %v866
        %1120 = vmatpush1.msra.mxu0 %v865
        %1121 = vmatprep.subr.mxu0 %v882
        %1122 = vmatpush1.msra.mxu0 %v881
        %1123 = vmatprep.subr.mxu0 %v898
        %1124 = vmatpush1.msra.mxu0 %v897
        %1125 = vmatprep.subr.mxu0 %v914
        %1126 = vmatpush1.msra.mxu0 %v913
        %1127 = vmatprep.subr.mxu0 %v930
        %1128 = vmatpush1.msra.mxu0 %v929
        %1129 = vmatprep.subr.mxu0 %v946
        %1130 = vmatpush1.msra.mxu0 %v945
        %1131 = vmatprep.subr.mxu0 %v996
        %1132 = vmatpush1.msra.mxu0 %v993
        %1133 = vmatprep.subr.mxu0 0.0
        %1134 = vmatpush1.msra.mxu0 0.0
        %1135 = vmatprep.subr.mxu0 0.0
        %1136 = vmatpush1.msra.mxu0 0.0
        %1137 = vmatprep.subr.mxu0 0.0
        %1138 = vmatpush1.msra.mxu0 0.0
        %1139 = vmatprep.subr.mxu0 0.0
        %1140 = vmatpush1.msra.mxu0 0.0
        %1141 = vmatprep.subr.mxu0 0.0
        %1142 = vmatpush1.msra.mxu0 0.0
        %1143 = vmatprep.subr.mxu0 0.0
        %1144 = vmatpush1.msra.mxu0 0.0
        %1145 = vmatprep.subr.mxu0 0.0
        %1146 = vmatpush1.msra.mxu0 0.0
        %1147 = vmatprep.subr.mxu0 0.0
        %1148 = vmatpush1.msra.mxu0 0.0
        %1149 = vmatprep.subr.mxu0 0.0
        %1150 = vmatpush1.msra.mxu0 0.0
        %1151 = vmatprep.subr.mxu0 0.0
        %1152 = vmatpush1.msra.mxu0 0.0
        %1153 = vmatprep.subr.mxu0 0.0
        %1154 = vmatpush1.msra.mxu0 0.0
        %1155 = vmatprep.subr.mxu0 0.0
        %1156 = vmatpush1.msra.mxu0 0.0
        %1157 = vmatprep.subr.mxu0 0.0
        %1158 = vmatpush1.msra.mxu0 0.0
        %1159 = vmatprep.subr.mxu0 0.0
        %1160 = vmatpush1.msra.mxu0 0.0
        %1161 = vmatprep.subr.mxu0 0.0
        %1162 = vmatpush1.msra.mxu0 0.0
        %1163 = vmatprep.subr.mxu0 0.0
        %1164 = vmatpush1.msra.mxu0 0.0
        %1165 = vmatprep.subr.mxu0 0.0
        %1166 = vmatpush1.msra.mxu0 0.0
        %1167 = vmatprep.subr.mxu0 0.0
        %1168 = vmatpush1.msra.mxu0 0.0
        %1169 = vmatprep.mubr.f32.mxu0 0.0
        %1170 = vmatmul.mubr.f32.gmra.mrb[0].mxu0 %v983
        %v1171 = vpop.f32.mrb[0].mxu0
        %v1172 = vadd.f32 %v979, %v1171
        %v1173 = vpop.f32.mrb[0].mxu0
        %v1174 = vadd.f32 %v979, %v1173
        %1175 = vdwg.mxu0
        %1176 = vmatprep.subr.mxu0 %v756
        %1177 = vmatpush1.msra.mxu0 %v755
        %1178 = vmatprep.subr.mxu0 %v772
        %1179 = vmatpush1.msra.mxu0 %v771
        %1180 = vmatprep.subr.mxu0 %v788
        %1181 = vmatpush1.msra.mxu0 %v787
        %1182 = vmatprep.subr.mxu0 %v804
        %1183 = vmatpush1.msra.mxu0 %v803
        %1184 = vmatprep.subr.mxu0 %v820
        %1185 = vmatpush1.msra.mxu0 %v819
        %1186 = vmatprep.subr.mxu0 %v836
        %1187 = vmatpush1.msra.mxu0 %v835
        %1188 = vmatprep.subr.mxu0 %v852
        %1189 = vmatpush1.msra.mxu0 %v851
        %1190 = vmatprep.subr.mxu0 %v868
        %1191 = vmatpush1.msra.mxu0 %v867
        %1192 = vmatprep.subr.mxu0 %v884
        %1193 = vmatpush1.msra.mxu0 %v883
        %1194 = vmatprep.subr.mxu0 %v900
        %1195 = vmatpush1.msra.mxu0 %v899
        %1196 = vmatprep.subr.mxu0 %v916
        %1197 = vmatpush1.msra.mxu0 %v915
        %1198 = vmatprep.subr.mxu0 %v932
        %1199 = vmatpush1.msra.mxu0 %v931
        %1200 = vmatprep.subr.mxu0 %v948
        %1201 = vmatpush1.msra.mxu0 %v947
        %1202 = vmatprep.subr.mxu0 %v1002
        %1203 = vmatpush1.msra.mxu0 %v999
        %1204 = vmatprep.subr.mxu0 0.0
        %1205 = vmatpush1.msra.mxu0 0.0
        %1206 = vmatprep.subr.mxu0 0.0
        %1207 = vmatpush1.msra.mxu0 0.0
        %1208 = vmatprep.subr.mxu0 0.0
        %1209 = vmatpush1.msra.mxu0 0.0
        %1210 = vmatprep.subr.mxu0 0.0
        %1211 = vmatpush1.msra.mxu0 0.0
        %1212 = vmatprep.subr.mxu0 0.0
        %1213 = vmatpush1.msra.mxu0 0.0
        %1214 = vmatprep.subr.mxu0 0.0
        %1215 = vmatpush1.msra.mxu0 0.0
        %1216 = vmatprep.subr.mxu0 0.0
        %1217 = vmatpush1.msra.mxu0 0.0
        %1218 = vmatprep.subr.mxu0 0.0
        %1219 = vmatpush1.msra.mxu0 0.0
        %1220 = vmatprep.subr.mxu0 0.0
        %1221 = vmatpush1.msra.mxu0 0.0
        %1222 = vmatprep.subr.mxu0 0.0
        %1223 = vmatpush1.msra.mxu0 0.0
        %1224 = vmatprep.subr.mxu0 0.0
        %1225 = vmatpush1.msra.mxu0 0.0
        %1226 = vmatprep.subr.mxu0 0.0
        %1227 = vmatpush1.msra.mxu0 0.0
        %1228 = vmatprep.subr.mxu0 0.0
        %1229 = vmatpush1.msra.mxu0 0.0
        %1230 = vmatprep.subr.mxu0 0.0
        %1231 = vmatpush1.msra.mxu0 0.0
        %1232 = vmatprep.subr.mxu0 0.0
        %1233 = vmatpush1.msra.mxu0 0.0
        %1234 = vmatprep.subr.mxu0 0.0
        %1235 = vmatpush1.msra.mxu0 0.0
        %1236 = vmatprep.subr.mxu0 0.0
        %1237 = vmatpush1.msra.mxu0 0.0
        %1238 = vmatprep.subr.mxu0 0.0
        %1239 = vmatpush1.msra.mxu0 0.0
        %1240 = vmatprep.mubr.f32.mxu0 0.0
        %1241 = vmatmul.mubr.f32.gmra.mrb[0].mxu0 %v983
        %v1242 = vpop.f32.mrb[0].mxu0
        %v1243 = vadd.f32 %v979, %v1242
        %v1244 = vpop.f32.mrb[0].mxu0
        %v1245 = vadd.f32 %v979, %v1244
        %1246 = vdwg.mxu0
        %1247 = vmatprep.subr.mxu0 %v758
        %1248 = vmatpush1.msra.mxu0 %v757
        %1249 = vmatprep.subr.mxu0 %v774
        %1250 = vmatpush1.msra.mxu0 %v773
        %1251 = vmatprep.subr.mxu0 %v790
        %1252 = vmatpush1.msra.mxu0 %v789
        %1253 = vmatprep.subr.mxu0 %v806
        %1254 = vmatpush1.msra.mxu0 %v805
        %1255 = vmatprep.subr.mxu0 %v822
        %1256 = vmatpush1.msra.mxu0 %v821
        %1257 = vmatprep.subr.mxu0 %v838
        %1258 = vmatpush1.msra.mxu0 %v837
        %1259 = vmatprep.subr.mxu0 %v854
        %1260 = vmatpush1.msra.mxu0 %v853
        %1261 = vmatprep.subr.mxu0 %v870
        %1262 = vmatpush1.msra.mxu0 %v869
        %1263 = vmatprep.subr.mxu0 %v886
        %1264 = vmatpush1.msra.mxu0 %v885
        %1265 = vmatprep.subr.mxu0 %v902
        %1266 = vmatpush1.msra.mxu0 %v901
        %1267 = vmatprep.subr.mxu0 %v918
        %1268 = vmatpush1.msra.mxu0 %v917
        %1269 = vmatprep.subr.mxu0 %v934
        %1270 = vmatpush1.msra.mxu0 %v933
        %1271 = vmatprep.subr.mxu0 %v950
        %1272 = vmatpush1.msra.mxu0 %v949
        %1273 = vmatprep.subr.mxu0 %v1008
        %1274 = vmatpush1.msra.mxu0 %v1005
        %1275 = vmatprep.subr.mxu0 0.0
        %1276 = vmatpush1.msra.mxu0 0.0
        %1277 = vmatprep.subr.mxu0 0.0
        %1278 = vmatpush1.msra.mxu0 0.0
        %1279 = vmatprep.subr.mxu0 0.0
        %1280 = vmatpush1.msra.mxu0 0.0
        %1281 = vmatprep.subr.mxu0 0.0
        %1282 = vmatpush1.msra.mxu0 0.0
        %1283 = vmatprep.subr.mxu0 0.0
        %1284 = vmatpush1.msra.mxu0 0.0
        %1285 = vmatprep.subr.mxu0 0.0
        %1286 = vmatpush1.msra.mxu0 0.0
        %1287 = vmatprep.subr.mxu0 0.0
        %1288 = vmatpush1.msra.mxu0 0.0
        %1289 = vmatprep.subr.mxu0 0.0
        %1290 = vmatpush1.msra.mxu0 0.0
        %1291 = vmatprep.subr.mxu0 0.0
        %1292 = vmatpush1.msra.mxu0 0.0
        %1293 = vmatprep.subr.mxu0 0.0
        %1294 = vmatpush1.msra.mxu0 0.0
        %1295 = vmatprep.subr.mxu0 0.0
        %1296 = vmatpush1.msra.mxu0 0.0
        %1297 = vmatprep.subr.mxu0 0.0
        %1298 = vmatpush1.msra.mxu0 0.0
        %1299 = vmatprep.subr.mxu0 0.0
        %1300 = vmatpush1.msra.mxu0 0.0
        %1301 = vmatprep.subr.mxu0 0.0
        %1302 = vmatpush1.msra.mxu0 0.0
        %1303 = vmatprep.subr.mxu0 0.0
        %1304 = vmatpush1.msra.mxu0 0.0
        %1305 = vmatprep.subr.mxu0 0.0
        %1306 = vmatpush1.msra.mxu0 0.0
        %1307 = vmatprep.subr.mxu0 0.0
        %1308 = vmatpush1.msra.mxu0 0.0
        %1309 = vmatprep.subr.mxu0 0.0
        %1310 = vmatpush1.msra.mxu0 0.0
        %1311 = vmatprep.mubr.f32.mxu0 0.0
        %1312 = vmatmul.mubr.f32.gmra.mrb[0].mxu0 %v983
        %v1313 = vpop.f32.mrb[0].mxu0
        %v1314 = vadd.f32 %v979, %v1313
        %v1315 = vpop.f32.mrb[0].mxu0
        %v1316 = vadd.f32 %v979, %v1315
        %1317 = vdwg.mxu0
        %1318 = vmatprep.subr.mxu0 %v760
        %1319 = vmatpush1.msra.mxu0 %v759
        %1320 = vmatprep.subr.mxu0 %v776
        %1321 = vmatpush1.msra.mxu0 %v775
        %1322 = vmatprep.subr.mxu0 %v792
        %1323 = vmatpush1.msra.mxu0 %v791
        %1324 = vmatprep.subr.mxu0 %v808
        %1325 = vmatpush1.msra.mxu0 %v807
        %1326 = vmatprep.subr.mxu0 %v824
        %1327 = vmatpush1.msra.mxu0 %v823
        %1328 = vmatprep.subr.mxu0 %v840
        %1329 = vmatpush1.msra.mxu0 %v839
        %1330 = vmatprep.subr.mxu0 %v856
        %1331 = vmatpush1.msra.mxu0 %v855
        %1332 = vmatprep.subr.mxu0 %v872
        %1333 = vmatpush1.msra.mxu0 %v871
        %1334 = vmatprep.subr.mxu0 %v888
        %1335 = vmatpush1.msra.mxu0 %v887
        %1336 = vmatprep.subr.mxu0 %v904
        %1337 = vmatpush1.msra.mxu0 %v903
        %1338 = vmatprep.subr.mxu0 %v920
        %1339 = vmatpush1.msra.mxu0 %v919
        %1340 = vmatprep.subr.mxu0 %v936
        %1341 = vmatpush1.msra.mxu0 %v935
        %1342 = vmatprep.subr.mxu0 %v952
        %1343 = vmatpush1.msra.mxu0 %v951
        %1344 = vmatprep.subr.mxu0 %v1014
        %1345 = vmatpush1.msra.mxu0 %v1011
        %1346 = vmatprep.subr.mxu0 0.0
        %1347 = vmatpush1.msra.mxu0 0.0
        %1348 = vmatprep.subr.mxu0 0.0
        %1349 = vmatpush1.msra.mxu0 0.0
        %1350 = vmatprep.subr.mxu0 0.0
        %1351 = vmatpush1.msra.mxu0 0.0
        %1352 = vmatprep.subr.mxu0 0.0
        %1353 = vmatpush1.msra.mxu0 0.0
        %1354 = vmatprep.subr.mxu0 0.0
        %1355 = vmatpush1.msra.mxu0 0.0
        %1356 = vmatprep.subr.mxu0 0.0
        %1357 = vmatpush1.msra.mxu0 0.0
        %1358 = vmatprep.subr.mxu0 0.0
        %1359 = vmatpush1.msra.mxu0 0.0
        %1360 = vmatprep.subr.mxu0 0.0
        %1361 = vmatpush1.msra.mxu0 0.0
        %1362 = vmatprep.subr.mxu0 0.0
        %1363 = vmatpush1.msra.mxu0 0.0
        %1364 = vmatprep.subr.mxu0 0.0
        %1365 = vmatpush1.msra.mxu0 0.0
        %1366 = vmatprep.subr.mxu0 0.0
        %1367 = vmatpush1.msra.mxu0 0.0
        %1368 = vmatprep.subr.mxu0 0.0
        %1369 = vmatpush1.msra.mxu0 0.0
        %1370 = vmatprep.subr.mxu0 0.0
        %1371 = vmatpush1.msra.mxu0 0.0
        %1372 = vmatprep.subr.mxu0 0.0
        %1373 = vmatpush1.msra.mxu0 0.0
        %1374 = vmatprep.subr.mxu0 0.0
        %1375 = vmatpush1.msra.mxu0 0.0
        %1376 = vmatprep.subr.mxu0 0.0
        %1377 = vmatpush1.msra.mxu0 0.0
        %1378 = vmatprep.subr.mxu0 0.0
        %1379 = vmatpush1.msra.mxu0 0.0
        %1380 = vmatprep.subr.mxu0 0.0
        %1381 = vmatpush1.msra.mxu0 0.0
        %1382 = vmatprep.mubr.f32.mxu0 0.0
        %1383 = vmatmul.mubr.f32.gmra.mrb[0].mxu0 %v983
        %v1384 = vpop.f32.mrb[0].mxu0
        %v1385 = vadd.f32 %v979, %v1384
        %v1386 = vpop.f32.mrb[0].mxu0
        %v1387 = vadd.f32 %v979, %v1386
        %1388 = vdwg.mxu0
        %1389 = vmatprep.subr.mxu0 %v762
        %1390 = vmatpush1.msra.mxu0 %v761
        %1391 = vmatprep.subr.mxu0 %v778
        %1392 = vmatpush1.msra.mxu0 %v777
        %1393 = vmatprep.subr.mxu0 %v794
        %1394 = vmatpush1.msra.mxu0 %v793
        %1395 = vmatprep.subr.mxu0 %v810
        %1396 = vmatpush1.msra.mxu0 %v809
        %1397 = vmatprep.subr.mxu0 %v826
        %1398 = vmatpush1.msra.mxu0 %v825
        %1399 = vmatprep.subr.mxu0 %v842
        %1400 = vmatpush1.msra.mxu0 %v841
        %1401 = vmatprep.subr.mxu0 %v858
        %1402 = vmatpush1.msra.mxu0 %v857
        %1403 = vmatprep.subr.mxu0 %v874
        %1404 = vmatpush1.msra.mxu0 %v873
        %1405 = vmatprep.subr.mxu0 %v890
        %1406 = vmatpush1.msra.mxu0 %v889
        %1407 = vmatprep.subr.mxu0 %v906
        %1408 = vmatpush1.msra.mxu0 %v905
        %1409 = vmatprep.subr.mxu0 %v922
        %1410 = vmatpush1.msra.mxu0 %v921
        %1411 = vmatprep.subr.mxu0 %v938
        %1412 = vmatpush1.msra.mxu0 %v937
        %1413 = vmatprep.subr.mxu0 %v954
        %1414 = vmatpush1.msra.mxu0 %v953
        %1415 = vmatprep.subr.mxu0 %v1020
        %1416 = vmatpush1.msra.mxu0 %v1017
        %1417 = vmatprep.subr.mxu0 0.0
        %1418 = vmatpush1.msra.mxu0 0.0
        %1419 = vmatprep.subr.mxu0 0.0
        %1420 = vmatpush1.msra.mxu0 0.0
        %1421 = vmatprep.subr.mxu0 0.0
        %1422 = vmatpush1.msra.mxu0 0.0
        %1423 = vmatprep.subr.mxu0 0.0
        %1424 = vmatpush1.msra.mxu0 0.0
        %1425 = vmatprep.subr.mxu0 0.0
        %1426 = vmatpush1.msra.mxu0 0.0
        %1427 = vmatprep.subr.mxu0 0.0
        %1428 = vmatpush1.msra.mxu0 0.0
        %1429 = vmatprep.subr.mxu0 0.0
        %1430 = vmatpush1.msra.mxu0 0.0
        %1431 = vmatprep.subr.mxu0 0.0
        %1432 = vmatpush1.msra.mxu0 0.0
        %1433 = vmatprep.subr.mxu0 0.0
        %1434 = vmatpush1.msra.mxu0 0.0
        %1435 = vmatprep.subr.mxu0 0.0
        %1436 = vmatpush1.msra.mxu0 0.0
        %1437 = vmatprep.subr.mxu0 0.0
        %1438 = vmatpush1.msra.mxu0 0.0
        %1439 = vmatprep.subr.mxu0 0.0
        %1440 = vmatpush1.msra.mxu0 0.0
        %1441 = vmatprep.subr.mxu0 0.0
        %1442 = vmatpush1.msra.mxu0 0.0
        %1443 = vmatprep.subr.mxu0 0.0
        %1444 = vmatpush1.msra.mxu0 0.0
        %1445 = vmatprep.subr.mxu0 0.0
        %1446 = vmatpush1.msra.mxu0 0.0
        %1447 = vmatprep.subr.mxu0 0.0
        %1448 = vmatpush1.msra.mxu0 0.0
        %1449 = vmatprep.subr.mxu0 0.0
        %1450 = vmatpush1.msra.mxu0 0.0
        %1451 = vmatprep.subr.mxu0 0.0
        %1452 = vmatpush1.msra.mxu0 0.0
        %1453 = vmatprep.mubr.f32.mxu0 0.0
        %1454 = vmatmul.mubr.f32.gmra.mrb[0].mxu0 %v983
        %v1455 = vpop.f32.mrb[0].mxu0
        %v1456 = vadd.f32 %v979, %v1455
        %v1457 = vpop.f32.mrb[0].mxu0
        %v1458 = vadd.f32 %v979, %v1457
        %1459 = vdwg.mxu0
        %1460 = vmatprep.subr.mxu0 %v764
        %1461 = vmatpush1.msra.mxu0 %v763
        %1462 = vmatprep.subr.mxu0 %v780
        %1463 = vmatpush1.msra.mxu0 %v779
        %1464 = vmatprep.subr.mxu0 %v796
        %1465 = vmatpush1.msra.mxu0 %v795
        %1466 = vmatprep.subr.mxu0 %v812
        %1467 = vmatpush1.msra.mxu0 %v811
        %1468 = vmatprep.subr.mxu0 %v828
        %1469 = vmatpush1.msra.mxu0 %v827
        %1470 = vmatprep.subr.mxu0 %v844
        %1471 = vmatpush1.msra.mxu0 %v843
        %1472 = vmatprep.subr.mxu0 %v860
        %1473 = vmatpush1.msra.mxu0 %v859
        %1474 = vmatprep.subr.mxu0 %v876
        %1475 = vmatpush1.msra.mxu0 %v875
        %1476 = vmatprep.subr.mxu0 %v892
        %1477 = vmatpush1.msra.mxu0 %v891
        %1478 = vmatprep.subr.mxu0 %v908
        %1479 = vmatpush1.msra.mxu0 %v907
        %1480 = vmatprep.subr.mxu0 %v924
        %1481 = vmatpush1.msra.mxu0 %v923
        %1482 = vmatprep.subr.mxu0 %v940
        %1483 = vmatpush1.msra.mxu0 %v939
        %1484 = vmatprep.subr.mxu0 %v956
        %1485 = vmatpush1.msra.mxu0 %v955
        %1486 = vmatprep.subr.mxu0 %v1026
        %1487 = vmatpush1.msra.mxu0 %v1023
        %1488 = vmatprep.subr.mxu0 0.0
        %1489 = vmatpush1.msra.mxu0 0.0
        %1490 = vmatprep.subr.mxu0 0.0
        %1491 = vmatpush1.msra.mxu0 0.0
        %1492 = vmatprep.subr.mxu0 0.0
        %1493 = vmatpush1.msra.mxu0 0.0
        %1494 = vmatprep.subr.mxu0 0.0
        %1495 = vmatpush1.msra.mxu0 0.0
        %1496 = vmatprep.subr.mxu0 0.0
        %1497 = vmatpush1.msra.mxu0 0.0
        %1498 = vmatprep.subr.mxu0 0.0
        %1499 = vmatpush1.msra.mxu0 0.0
        %1500 = vmatprep.subr.mxu0 0.0
        %1501 = vmatpush1.msra.mxu0 0.0
        %1502 = vmatprep.subr.mxu0 0.0
        %1503 = vmatpush1.msra.mxu0 0.0
        %1504 = vmatprep.subr.mxu0 0.0
        %1505 = vmatpush1.msra.mxu0 0.0
        %1506 = vmatprep.subr.mxu0 0.0
        %1507 = vmatpush1.msra.mxu0 0.0
        %1508 = vmatprep.subr.mxu0 0.0
        %1509 = vmatpush1.msra.mxu0 0.0
        %1510 = vmatprep.subr.mxu0 0.0
        %1511 = vmatpush1.msra.mxu0 0.0
        %1512 = vmatprep.subr.mxu0 0.0
        %1513 = vmatpush1.msra.mxu0 0.0
        %1514 = vmatprep.subr.mxu0 0.0
        %1515 = vmatpush1.msra.mxu0 0.0
        %1516 = vmatprep.subr.mxu0 0.0
        %1517 = vmatpush1.msra.mxu0 0.0
        %1518 = vmatprep.subr.mxu0 0.0
        %1519 = vmatpush1.msra.mxu0 0.0
        %1520 = vmatprep.subr.mxu0 0.0
        %1521 = vmatpush1.msra.mxu0 0.0
        %1522 = vmatprep.subr.mxu0 0.0
        %1523 = vmatpush1.msra.mxu0 0.0
        %1524 = vmatprep.mubr.f32.mxu0 0.0
        %1525 = vmatmul.mubr.f32.gmra.mrb[0].mxu0 %v983
        %v1526 = vpop.f32.mrb[0].mxu0
        %v1527 = vadd.f32 %v979, %v1526
        %v1528 = vpop.f32.mrb[0].mxu0
        %v1529 = vadd.f32 %v979, %v1528
        %1530 = vdwg.mxu0
        %1531 = vmatprep.subr.mxu0 %v766
        %1532 = vmatpush1.msra.mxu0 %v765
        %1533 = vmatprep.subr.mxu0 %v782
        %1534 = vmatpush1.msra.mxu0 %v781
        %1535 = vmatprep.subr.mxu0 %v798
        %1536 = vmatpush1.msra.mxu0 %v797
        %1537 = vmatprep.subr.mxu0 %v814
        %1538 = vmatpush1.msra.mxu0 %v813
        %1539 = vmatprep.subr.mxu0 %v830
        %1540 = vmatpush1.msra.mxu0 %v829
        %1541 = vmatprep.subr.mxu0 %v846
        %1542 = vmatpush1.msra.mxu0 %v845
        %1543 = vmatprep.subr.mxu0 %v862
        %1544 = vmatpush1.msra.mxu0 %v861
        %1545 = vmatprep.subr.mxu0 %v878
        %1546 = vmatpush1.msra.mxu0 %v877
        %1547 = vmatprep.subr.mxu0 %v894
        %1548 = vmatpush1.msra.mxu0 %v893
        %1549 = vmatprep.subr.mxu0 %v910
        %1550 = vmatpush1.msra.mxu0 %v909
        %1551 = vmatprep.subr.mxu0 %v926
        %1552 = vmatpush1.msra.mxu0 %v925
        %1553 = vmatprep.subr.mxu0 %v942
        %1554 = vmatpush1.msra.mxu0 %v941
        %1555 = vmatprep.subr.mxu0 %v958
        %1556 = vmatpush1.msra.mxu0 %v957
        %1557 = vmatprep.subr.mxu0 %v1032
        %1558 = vmatpush1.msra.mxu0 %v1029
        %1559 = vmatprep.subr.mxu0 0.0
        %1560 = vmatpush1.msra.mxu0 0.0
        %1561 = vmatprep.subr.mxu0 0.0
        %1562 = vmatpush1.msra.mxu0 0.0
        %1563 = vmatprep.subr.mxu0 0.0
        %1564 = vmatpush1.msra.mxu0 0.0
        %1565 = vmatprep.subr.mxu0 0.0
        %1566 = vmatpush1.msra.mxu0 0.0
        %1567 = vmatprep.subr.mxu0 0.0
        %1568 = vmatpush1.msra.mxu0 0.0
        %1569 = vmatprep.subr.mxu0 0.0
        %1570 = vmatpush1.msra.mxu0 0.0
        %1571 = vmatprep.subr.mxu0 0.0
        %1572 = vmatpush1.msra.mxu0 0.0
        %1573 = vmatprep.subr.mxu0 0.0
        %1574 = vmatpush1.msra.mxu0 0.0
        %1575 = vmatprep.subr.mxu0 0.0
        %1576 = vmatpush1.msra.mxu0 0.0
        %1577 = vmatprep.subr.mxu0 0.0
        %1578 = vmatpush1.msra.mxu0 0.0
        %1579 = vmatprep.subr.mxu0 0.0
        %1580 = vmatpush1.msra.mxu0 0.0
        %1581 = vmatprep.subr.mxu0 0.0
        %1582 = vmatpush1.msra.mxu0 0.0
        %1583 = vmatprep.subr.mxu0 0.0
        %1584 = vmatpush1.msra.mxu0 0.0
        %1585 = vmatprep.subr.mxu0 0.0
        %1586 = vmatpush1.msra.mxu0 0.0
        %1587 = vmatprep.subr.mxu0 0.0
        %1588 = vmatpush1.msra.mxu0 0.0
        %1589 = vmatprep.subr.mxu0 0.0
        %1590 = vmatpush1.msra.mxu0 0.0
        %1591 = vmatprep.subr.mxu0 0.0
        %1592 = vmatpush1.msra.mxu0 0.0
        %1593 = vmatprep.subr.mxu0 0.0
        %1594 = vmatpush1.msra.mxu0 0.0
        %1595 = vmatprep.mubr.f32.mxu0 0.0
        %1596 = vmatmul.mubr.f32.gmra.mrb[0].mxu0 %v983
        %v1597 = vpop.f32.mrb[0].mxu0
        %v1598 = vadd.f32 %v979, %v1597
        %v1599 = vpop.f32.mrb[0].mxu0
        %v1600 = vadd.f32 %v979, %v1599
        %1601 = vdwg.mxu0
        %1602 = vst [vmem:[%s711] sm:$0xff] %v1101
        %1603 = vst [vmem:[%s711 + $0x8] sm:$0xff] %v1103
        %1604 = vst [vmem:[%s711 + $0x10] sm:$0xff] %v1172
        %1605 = vst [vmem:[%s711 + $0x18] sm:$0xff] %v1174
        %1606 = vst [vmem:[%s711 + $0x20] sm:$0xff] %v1243
        %1607 = vst [vmem:[%s711 + $0x28] sm:$0xff] %v1245
        %1608 = vst [vmem:[%s711 + $0x30] sm:$0xff] %v1314
        %1609 = vst [vmem:[%s711 + $0x38] sm:$0xff] %v1316
        %1610 = vst [vmem:[%s711 + $0x40] sm:$0xff] %v1385
        %1611 = vst [vmem:[%s711 + $0x48] sm:$0xff] %v1387
        %1612 = vst [vmem:[%s711 + $0x50] sm:$0xff] %v1456
        %1613 = vst [vmem:[%s711 + $0x58] sm:$0xff] %v1458
        %1614 = vst [vmem:[%s711 + $0x60] sm:$0xff] %v1527
        %1615 = vst [vmem:[%s711 + $0x68] sm:$0xff] %v1529
        %1616 = vst [vmem:[%s711 + $0x70] sm:$0xff] %v1598
        %1617 = vst [vmem:[%s711 + $0x78] sm:$0xff] %v1600
        %v1618 = vadd.f32 %v1101, %v1103
        %v1619 = vadd.f32 %v1618, %v1172
        %v1620 = vadd.f32 %v1619, %v1174
        %v1621 = vadd.f32 %v1620, %v1243
        %v1622 = vadd.f32 %v1621, %v1245
        %v1623 = vadd.f32 %v1622, %v1314
        %v1624 = vadd.f32 %v1623, %v1316
        %v1625 = vadd.f32 %v1624, %v1385
        %v1626 = vadd.f32 %v1625, %v1387
        %v1627 = vadd.f32 %v1626, %v1456
        %v1628 = vadd.f32 %v1627, %v1458
        %v1629 = vadd.f32 %v1628, %v1527
        %v1630 = vadd.f32 %v1629, %v1529
        %v1631 = vadd.f32 %v1630, %v1598
        %v1632 = vadd.f32 %v1631, %v1600
        %1633 = vadd.xlane.f32.xlu0 %v1632
        %v1634 = vpop.xlane.xlu0 %1633
        %vm1635 = vcmask 7168
        %1636 = vst.msk [vmem:[%s741] sm:$0xff] %vm1635, %v1634
        %v1637 = vmul.f32 %v1101, %v1101
        %v1638 = vmul.f32 %v1103, %v1103
        %v1639 = vmul.f32 %v1172, %v1172
        %v1640 = vmul.f32 %v1174, %v1174
        %v1641 = vmul.f32 %v1243, %v1243
        %v1642 = vmul.f32 %v1245, %v1245
        %v1643 = vmul.f32 %v1314, %v1314
        %v1644 = vmul.f32 %v1316, %v1316
        %v1645 = vmul.f32 %v1385, %v1385
        %v1646 = vmul.f32 %v1387, %v1387
        %v1647 = vmul.f32 %v1456, %v1456
        %v1648 = vmul.f32 %v1458, %v1458
        %v1649 = vmul.f32 %v1527, %v1527
        %v1650 = vmul.f32 %v1529, %v1529
        %v1651 = vmul.f32 %v1598, %v1598
        %v1652 = vmul.f32 %v1600, %v1600
        %v1653 = vadd.f32 %v1637, %v1638
        %v1654 = vadd.f32 %v1653, %v1639
        %v1655 = vadd.f32 %v1654, %v1640
        %v1656 = vadd.f32 %v1655, %v1641
        %v1657 = vadd.f32 %v1656, %v1642
        %v1658 = vadd.f32 %v1657, %v1643
        %v1659 = vadd.f32 %v1658, %v1644
        %v1660 = vadd.f32 %v1659, %v1645
        %v1661 = vadd.f32 %v1660, %v1646
        %v1662 = vadd.f32 %v1661, %v1647
        %v1663 = vadd.f32 %v1662, %v1648
        %v1664 = vadd.f32 %v1663, %v1649
        %v1665 = vadd.f32 %v1664, %v1650
        %v1666 = vadd.f32 %v1665, %v1651
        %v1667 = vadd.f32 %v1666, %v1652
        %1668 = vadd.xlane.f32.xlu0 %v1667
        %v1669 = vpop.xlane.xlu0 %1668
        %1670 = vst.msk [vmem:[%s749] sm:$0xff] %vm1635, %v1669
        %s1671 = sand.u32 %s112, 1
        %s1672 = scalar_lea.sflag [#allocation4], %s1671
        %s1673 = sand.u32 %s112, 1
        %s1674 = smul.addr %s1673, 128
        %s1675 = scalar_lea.vmem [#allocation3], %s1674
        %p1676 = scmp.lt.s32.totalorder %s24, 1
        %s1677 = scalar_select %p1676, %s24, 1
        %p1678 = scmp.lt.s32.totalorder %s25, 1
        %s1679 = scalar_select %p1678, %s25, 1
        %s1680 = smul.addr %s1677, 2
        %s1681 = sadd.s32 %s1679, %s1680
        %s1682 = smul.addr %s1681, 8
        %s1683 = scalar_lea.vmem %s4, %s1682
        %p1684 = scmp.lt.s32.totalorder %s24, 1
        %s1685 = scalar_select %p1684, %s24, 1
        %p1686 = scmp.lt.s32.totalorder %s25, 1
        %s1687 = scalar_select %p1686, %s25, 1
        %s1688 = smul.addr %s1685, 2
        %s1689 = sadd.s32 %s1687, %s1688
        %s1690 = smul.addr %s1689, 8
        %s1691 = scalar_lea.vmem %s5, %s1690
        // Predicated region
        $region56: #{tpu_custom_call.1} parent=50 // pred_check
          %p1692 = pneg %p122
        $region57: #{tpu_custom_call.1} parent=50 // pred_check_branch
          %1694 = sbr.rel (%p1692) target = $region59
        $region58: #{tpu_custom_call.1} parent=50 // pred_region
          %s1695 = smul.u32 16, %s25
          %s1697 = ssub.s32 2048, 2048
          %1698 = vsyncadd %s1672, %s1697
          %s1699 = smul.addr %s24, 32
          %s1700 = sadd.s32 %s1695, %s1699
          %s1701 = smul.addr %s1700, 128
          %s1702 = scalar_lea.hbm %s3, %s1701
          %s1704 = sshll.u32 %s1675, 4
          %s1705 = int_to_ptr.vmem [resolvable:$true] %s1704
          %1707 = dma.vmem_to_hbm [thread:$0]  %s1705, 2048, %s1702, %s1672
        $region59: #{tpu_custom_call.1} parent=50 // pred_fallthru
          _
        // Predicated region
        $region60: #{tpu_custom_call.1} parent=50 // pred_check
          %p1708 = pneg %p150
        $region61: #{tpu_custom_call.1} parent=50 // pred_check_branch
          %1710 = sbr.rel (%p1708) target = $region63
        $region62: #{tpu_custom_call.1} parent=50 // pred_region
          _
        $region63: #{tpu_custom_call.1} parent=50 // pred_fallthru
          _
        // Predicated region
        $region64: #{tpu_custom_call.1} parent=50 // pred_check
          %p1711 = pneg %p178
        $region65: #{tpu_custom_call.1} parent=50 // pred_check_branch
          %1713 = sbr.rel (%p1711) target = $region67
        $region66: #{tpu_custom_call.1} parent=50 // pred_region
          _
        $region67: #{tpu_custom_call.1} parent=50 // pred_fallthru
          _
      $region51: #{tpu_custom_call.1} parent=5 // pred_fallthru
        _
      %p1714 = scmp.le.s32.totalorder 2, %s15
      // Predicated region
      $region68: #{tpu_custom_call.1} parent=5 // pred_check
        %p1715 = pneg %p1714
      $region69: #{tpu_custom_call.1} parent=5 // pred_check_branch
        %1717 = sbr.rel (%p1715) target = $region71
      $region70: #{tpu_custom_call.1} parent=5 // pred_region
        %s1718 = ssub.s32 %s15, 2
        // Predicated region
        $region72: #{tpu_custom_call.1} parent=70 // pred_check
          %p1719 = pneg %p128
        $region73: #{tpu_custom_call.1} parent=70 // pred_check_branch
          %1721 = sbr.rel (%p1719) target = $region75
        $region74: #{tpu_custom_call.1} parent=70 // pred_region
          %s1722 = sand.u32 %s113, 1
          %s1723 = scalar_lea.sflag [#allocation4], %s1722
          %s1724 = sand.u32 %s113, 1
          %s1725 = smul.addr %s1724, 128
          %s1726 = scalar_lea.vmem [#allocation3], %s1725
          %1727 = dma.done %s1723, 2048
        $region75: #{tpu_custom_call.1} parent=70 // pred_fallthru
          _
        // Predicated region
        $region76: #{tpu_custom_call.1} parent=70 // pred_check
          %p1728 = pneg %p156
        $region77: #{tpu_custom_call.1} parent=70 // pred_check_branch
          %1730 = sbr.rel (%p1728) target = $region79
        $region78: #{tpu_custom_call.1} parent=70 // pred_region
          %p1731 = scmp.lt.s32.totalorder %s26, 1
          %s1732 = scalar_select %p1731, %s26, 1
          %p1733 = scmp.lt.s32.totalorder %s27, 1
          %s1734 = scalar_select %p1733, %s27, 1
          %s1735 = smul.addr %s1732, 2
          %s1736 = sadd.s32 %s1734, %s1735
          %s1737 = smul.addr %s1736, 8
          %s1738 = scalar_lea.vmem %s4, %s1737
        $region79: #{tpu_custom_call.1} parent=70 // pred_fallthru
          _
        // Predicated region
        $region80: #{tpu_custom_call.1} parent=70 // pred_check
          %p1739 = pneg %p184
        $region81: #{tpu_custom_call.1} parent=70 // pred_check_branch
          %1741 = sbr.rel (%p1739) target = $region83
        $region82: #{tpu_custom_call.1} parent=70 // pred_region
          %p1742 = scmp.lt.s32.totalorder %s26, 1
          %s1743 = scalar_select %p1742, %s26, 1
          %p1744 = scmp.lt.s32.totalorder %s27, 1
          %s1745 = scalar_select %p1744, %s27, 1
          %s1746 = smul.addr %s1743, 2
          %s1747 = sadd.s32 %s1745, %s1746
          %s1748 = smul.addr %s1747, 8
          %s1749 = scalar_lea.vmem %s5, %s1748
        $region83: #{tpu_custom_call.1} parent=70 // pred_fallthru
          _
      $region71: #{tpu_custom_call.1} parent=5 // pred_fallthru
        _
    $region6: #{tpu_custom_call.1} parent=1 // loop_footer
      %s19 = sadd.s32 1, %s15
    $region7: #{tpu_custom_call.1} parent=1 // loop_footer_branch
      %14 = sbr.rel target = $region3
    $region8: #{tpu_custom_call.1} parent=1 // loop_exit
      _
    %1750 = vsyncpa [#allocation4], 1
    %s1751 = scalar_lea.sflag [#allocation4], 1
    %1752 = vsyncpa %s1751, 1

</llo_original>
